<compile_context>
chip_gen: v7x
topology: tpu7x:2x2x1
jax: 0.10.0
libtpu: 0.0.40
codegen_flags: <defaults>
</compile_context>

<pallas_src>
import functools

import jax
import jax.numpy as jnp
from jax import lax
from jax.experimental import pallas as pl
from jax.experimental.pallas import tpu as pltpu

EPS = 1e-5

# MXU operand dtype.  f32 keeps close numerical parity with the PyTorch reference;
# flip to jnp.bfloat16 on v6e/v7x to halve HBM/VMEM traffic (accumulation stays f32
# via preferred_element_type).
MXU_DTYPE = jnp.float32

# Both grid axes (batch, Cout-tile) are data-parallel -> shard across v7x's two TCs.
_CPARAMS = pltpu.CompilerParams(dimension_semantics=("parallel", "parallel"))


def _cout_tile(cout: int) -> int:
    """Lane-friendly output-channel tile (full Cout for small layers)."""
    if cout > 256 and cout % 256 == 0:
        return 256
    return cout


# --------------------------------------------------------------------------
# Kernel: [optional BN+ReLU prologue] + Conv1d(k=3, pad=1) + partial BN stats
# --------------------------------------------------------------------------
# TODO(synk): add L-axis halo tiling for sequences whose per-sample (L, C) slab exceeds
#             VMEM; current tiling is over (batch, Cout-tiles) with the full L per block.
def _conv3_stats_kernel(x_ref, scale_ref, shift_ref, w_ref, ypre_ref, stats_ref,
                        *, apply_prologue: bool):
    """x_ref:     (1, L, Cin)  raw input (conv1) or previous conv's pre-BN output (conv2)
       scale_ref: (1, Cin)     folded BN scale (gamma*rstd)        -- unused for conv1
       shift_ref: (1, Cin)     folded BN shift (beta - mean*scale) -- unused for conv1
       w_ref:     (3*Cin, TC)  conv taps stacked along K: [W_{k=0}; W_{k=1}; W_{k=2}]
       ypre_ref:  (1, L, TC)   pre-BN conv output (conv bias dropped: cancels in BN)
       stats_ref: (1, 2, TC)   this sample's partial [sum; sum_of_squares] over L rows
    """
    x = x_ref[0].astype(jnp.float32)                                    # (L, Cin)
    if apply_prologue:
        # Previous layer's BatchNorm + ReLU folded to one FMA + max.
        x = jnp.maximum(x * scale_ref[...] + shift_ref[...], 0.0)
    L = x.shape[0]

    # k=3 / pad=1 shifted views via XLU roll + edge masks (no concat copies of x).
    row = lax.broadcasted_iota(jnp.int32, (L, 1), 0)
    x_prev = jnp.where(row == 0, 0.0, pltpu.roll(x, shift=1, axis=0))          # x[l-1]
    x_next = jnp.where(row == L - 1, 0.0, pltpu.roll(x, shift=L - 1, axis=0))  # x[l+1]

    # Single MXU pass with K = 3*Cin (taps folded along the contraction dim).
    xk = jnp.concatenate([x_prev, x, x_next], axis=-1).astype(MXU_DTYPE)       # (L, 3Cin)
    y = jnp.dot(xk, w_ref[...].astype(MXU_DTYPE),
                preferred_element_type=jnp.float32)                            # (L, TC)

    ypre_ref[0] = y
    # One-pass moments; finalized outside as E[y^2] - mean^2.
    s = jnp.sum(y, axis=0, keepdims=True)
    ss = jnp.sum(y * y, axis=0, keepdims=True)
    stats_ref[0] = jnp.concatenate([s, ss], axis=0)                            # (2, TC)


def conv3_stats(x_pre, scale, shift, w3, *, apply_prologue):
    """Conv1d(k=3, pad=1) over channels-last x, emitting pre-BN output + partial stats."""
    N, L, Cin = x_pre.shape
    Cout = w3.shape[-1]
    w2d = w3.reshape(3 * Cin, Cout)                  # [W0; W1; W2] stacked along K
    tc = _cout_tile(Cout)
    grid = (N, Cout // tc)
    kernel = functools.partial(_conv3_stats_kernel, apply_prologue=apply_prologue)
    return pl.pallas_call(
        kernel,
        grid=grid,
        in_specs=[
            pl.BlockSpec((1, L, Cin), lambda n, j: (n, 0, 0)),
            pl.BlockSpec((1, Cin), lambda n, j: (0, 0)),
            pl.BlockSpec((1, Cin), lambda n, j: (0, 0)),
            pl.BlockSpec((3 * Cin, tc), lambda n, j: (0, j)),
        ],
        out_specs=[
            pl.BlockSpec((1, L, tc), lambda n, j: (n, 0, j)),
            pl.BlockSpec((1, 2, tc), lambda n, j: (n, 0, j)),
        ],
        out_shape=[
            jax.ShapeDtypeStruct((N, L, Cout), jnp.float32),
            jax.ShapeDtypeStruct((N, 2, Cout), jnp.float32),
        ],
        compiler_params=_CPARAMS,
    )(x_pre, scale, shift, w2d)


# --------------------------------------------------------------------------
# Kernel: BN + ReLU epilogue, with MaxPool1d(2, 2) fused in (two outputs)
# --------------------------------------------------------------------------
def _bn_relu_pool_kernel(ypre_ref, scale_ref, shift_ref, x_ref, xp_ref):
    y = jnp.maximum(ypre_ref[0] * scale_ref[...] + shift_ref[...], 0.0)   # (L, TC)
    x_ref[0] = y
    L = y.shape[0]
    Lp = (L // 2) * 2                                # MaxPool1d floor mode (odd-L safe)
    yr = y[:Lp].reshape(Lp // 2, 2, y.shape[1])
    xp_ref[0] = jnp.maximum(yr[:, 0, :], yr[:, 1, :])


def _bn_relu_kernel(ypre_ref, scale_ref, shift_ref, x_ref):
    x_ref[0] = jnp.maximum(ypre_ref[0] * scale_ref[...] + shift_ref[...], 0.0)


def bn_relu_maybe_pool(ypre, scale, shift, *, pool):
    N, L, C = ypre.shape
    tc = _cout_tile(C)
    grid = (N, C // tc)
    in_specs = [
        pl.BlockSpec((1, L, tc), lambda n, j: (n, 0, j)),
        pl.BlockSpec((1, tc), lambda n, j: (0, j)),
        pl.BlockSpec((1, tc), lambda n, j: (0, j)),
    ]
    if pool:
        x_full, x_pooled = pl.pallas_call(
            _bn_relu_pool_kernel,
            grid=grid,
            in_specs=in_specs,
            out_specs=[
                pl.BlockSpec((1, L, tc), lambda n, j: (n, 0, j)),
                pl.BlockSpec((1, L // 2, tc), lambda n, j: (n, 0, j)),
            ],
            out_shape=[
                jax.ShapeDtypeStruct((N, L, C), jnp.float32),
                jax.ShapeDtypeStruct((N, L // 2, C), jnp.float32),
            ],
            compiler_params=_CPARAMS,
        )(ypre, scale, shift)
        return x_full, x_pooled
    x_full = pl.pallas_call(
        _bn_relu_kernel,
        grid=grid,
        in_specs=in_specs,
        out_specs=pl.BlockSpec((1, L, tc), lambda n, j: (n, 0, j)),
        out_shape=jax.ShapeDtypeStruct((N, L, C), jnp.float32),
        compiler_params=_CPARAMS,
    )(ypre, scale, shift)
    return x_full, x_full           # module semantics: no pooling when L == 1


# --------------------------------------------------------------------------
# Tiny XLA glue: fold batch statistics into a per-channel (scale, shift)
# --------------------------------------------------------------------------
def _fold_bn(stats, gamma, beta, count):
    """stats: (N, 2, C) partial [sum; sumsq].  Returns (scale, shift) with
    y*scale + shift == gamma*(y - mean)*rsqrt(var + eps) + beta (biased batch var)."""
    total = jnp.sum(stats, axis=0)                   # (2, C)
    mean = total[0] / count
    var = jnp.maximum(total[1] / count - mean * mean, 0.0)
    rstd = lax.rsqrt(var + EPS)
    scale = gamma.reshape(-1) * rstd
    shift = beta.reshape(-1) - mean * scale
    return scale.reshape(1, -1), shift.reshape(1, -1)


# --------------------------------------------------------------------------
# EncoderBlock1D forward
# --------------------------------------------------------------------------
def encoder_block_forward(params, x_ncl):
    """x_ncl: (N, C_in, L).  Returns (x_pooled, x) in NCL layout, like the PyTorch module."""
    x = jnp.transpose(x_ncl, (0, 2, 1)).astype(jnp.float32)   # (N, L, Cin) channels-last
    N, L, Cin = x.shape
    p1, p2 = params["conv1"], params["conv2"]
    count = N * L

    # conv1 (pre-BN) + batch statistics (dummy identity prologue).
    ones = jnp.ones((1, Cin), jnp.float32)
    zeros = jnp.zeros((1, Cin), jnp.float32)
    y1, st1 = conv3_stats(x, ones, zeros, p1["w"], apply_prologue=False)
    s1, b1 = _fold_bn(st1, p1["gamma"], p1["beta"], count)

    # BN1 + ReLU fused as the prologue of conv2; conv2 (pre-BN) + batch statistics.
    y2, st2 = conv3_stats(y1, s1, b1, p2["w"], apply_prologue=True)
    s2, b2 = _fold_bn(st2, p2["gamma"], p2["beta"], count)

    # BN2 + ReLU with MaxPool1d(2, 2) fused into the epilogue (pool only if L > 1).
    x_full, x_pooled = bn_relu_maybe_pool(y2, s2, b2, pool=L > 1)

    return jnp.transpose(x_pooled, (0, 2, 1)), jnp.transpose(x_full, (0, 2, 1))


# --------------------------------------------------------------------------
# Pure-JAX reference (same math, no Pallas) for in-script validation
# --------------------------------------------------------------------------
def _ref_forward(params, x_ncl):
    x = jnp.transpose(x_ncl, (0, 2, 1))

    def conv_bn_relu(x, p):
        N, L, Cin = x.shape
        xp = jnp.pad(x, ((0, 0), (1, 1), (0, 0)))
        y = sum(jnp.einsum("nlc,cd->nld", xp[:, k:k + L, :], p["w"][k]) for k in range(3))
        mean = jnp.mean(y, axis=(0, 1))
        var = jnp.mean((y - mean) ** 2, axis=(0, 1))
        y = (y - mean) * lax.rsqrt(var + EPS) * p["gamma"][0] + p["beta"][0]
        return jnp.maximum(y, 0.0)

    x = conv_bn_relu(x, params["conv1"])
    x = conv_bn_relu(x, params["conv2"])
    N, L, C = x.shape
    if L > 1:
        xp_ = jnp.max(x[:, :(L // 2) * 2, :].reshape(N, L // 2, 2, C), axis=2)
    else:
        xp_ = x
    return jnp.transpose(xp_, (0, 2, 1)), jnp.transpose(x, (0, 2, 1))


# --------------------------------------------------------------------------
# Parameter init (deterministic, synthetic)
# --------------------------------------------------------------------------
def init_params(key, in_channels, out_channels):
    ks = jax.random.split(key, 6)

    def conv_bn(kw, kg, kb, cin, cout, w_scale=0.1):
        return {
            # (K=3, Cin, Cout); tap k multiplies x[l + k - 1] (== PyTorch weight[:, :, k].T)
            "w": w_scale * jax.random.normal(kw, (3, cin, cout), jnp.float32),
            # NOTE: Conv1d bias intentionally omitted — it cancels exactly in the
            # following BatchNorm:  (y + b) - mean(y + b) == y - mean(y).
            "gamma": 1.0 + 0.1 * jax.random.normal(kg, (1, cout), jnp.float32),
            "beta": 0.1 * jax.random.normal(kb, (1, cout), jnp.float32),
        }

    return {
        "conv1": conv_bn(ks[0], ks[1], ks[2], in_channels, out_channels),
        "conv2": conv_bn(ks[3], ks[4], ks[5], out_channels, out_channels),
    }


if __name__ == "__main__":
    key = jax.random.PRNGKey(0)
    pkey, xkey = jax.random.split(key)

    in_channels, out_channels = 4, 32
    N, L = 2, 16
    params = init_params(pkey, in_channels, out_channels)
    x = jax.random.normal(xkey, (N, in_channels, L), jnp.float32)

    fwd = jax.jit(encoder_block_forward)
    x_pooled, x_full = fwd(params, x)
    x_pooled, x_full = jax.block_until_ready((x_pooled, x_full))

    assert x_full.shape == (N, out_channels, L), x_full.shape
    assert x_pooled.shape == (N, out_channels, L // 2), x_pooled.shape
    assert bool(jnp.all(jnp.isfinite(x_full))) and bool(jnp.all(jnp.isfinite(x_pooled)))

    ref_pooled, ref_full = _ref_forward(params, x)
    assert bool(jnp.allclose(x_full, ref_full, atol=1e-3, rtol=1e-3))
    assert bool(jnp.allclose(x_pooled, ref_pooled, atol=1e-3, rtol=1e-3))

    print("KERNEL_OK")
</pallas_src>

<mosaic_0001>
module attributes {stable_mosaic.version = 11 : i64} {
  func.func @_conv3_stats_kernel(%arg0: i32, %arg1: i32, %arg2: memref<1x16x4xf32, #tpu.memory_space<vmem>>, %arg3: memref<1x4xf32, #tpu.memory_space<vmem>>, %arg4: memref<1x4xf32, #tpu.memory_space<vmem>>, %arg5: memref<12x32xf32, #tpu.memory_space<vmem>>, %arg6: memref<1x16x32xf32, #tpu.memory_space<vmem>>, %arg7: memref<1x2x32xf32, #tpu.memory_space<vmem>>) attributes {dimension_semantics = [#tpu.dimension_semantics<parallel>, #tpu.dimension_semantics<parallel>], iteration_bounds = array<i64: 2, 1>, scalar_prefetch = 0 : i64, scratch_operands = 0 : i64, tpu.core_type = #tpu.core_type<tc>, window_params = [{transform_indices = @transform_0, window_bounds = array<i64: 1, 16, 4>}, {pipeline_mode = #tpu.pipeline_mode<synchronous>, transform_indices = @transform_1, window_bounds = array<i64: 1, 4>}, {pipeline_mode = #tpu.pipeline_mode<synchronous>, transform_indices = @transform_2, window_bounds = array<i64: 1, 4>}, {transform_indices = @transform_3, window_bounds = array<i64: 12, 32>}, {transform_indices = @transform_4, window_bounds = array<i64: 1, 16, 32>}, {transform_indices = @transform_5, window_bounds = array<i64: 1, 2, 32>}]} {
    %c0 = arith.constant 0 : index
    %c0_0 = arith.constant 0 : index
    %c0_1 = arith.constant 0 : index
    %0 = vector.load %arg2[%c0, %c0_0, %c0_1] : memref<1x16x4xf32, #tpu.memory_space<vmem>>, vector<1x16x4xf32>
    %1 = vector.shape_cast %0 : vector<1x16x4xf32> to vector<16x4xf32>
    %2 = tpu.iota {dimensions = array<i32: 0>} : vector<16x1xi32>
    %c0_i32 = arith.constant 0 : i32
    %3 = vector.broadcast %c0_i32 : i32 to vector<16x1xi32>
    %4 = arith.cmpi eq, %2, %3 : vector<16x1xi32>
    %c1_i32 = arith.constant 1 : i32
    %5 = tpu.dynamic_rotate %1 by %c1_i32 dim 0 : vector<16x4xf32>, i32 -> vector<16x4xf32>
    %cst = arith.constant 0.000000e+00 : f32
    %6 = vector.shape_cast %4 : vector<16x1xi1> to vector<16x1xi1>
    %7 = vector.broadcast %6 : vector<16x1xi1> to vector<16x4xi1>
    %8 = vector.broadcast %cst : f32 to vector<16x4xf32>
    %9 = arith.select %7, %8, %5 : vector<16x4xi1>, vector<16x4xf32>
    %c15_i32 = arith.constant 15 : i32
    %10 = vector.broadcast %c15_i32 : i32 to vector<16x1xi32>
    %11 = arith.cmpi eq, %2, %10 : vector<16x1xi32>
    %c15_i32_2 = arith.constant 15 : i32
    %12 = tpu.dynamic_rotate %1 by %c15_i32_2 dim 0 : vector<16x4xf32>, i32 -> vector<16x4xf32>
    %cst_3 = arith.constant 0.000000e+00 : f32
    %13 = vector.shape_cast %11 : vector<16x1xi1> to vector<16x1xi1>
    %14 = vector.broadcast %13 : vector<16x1xi1> to vector<16x4xi1>
    %15 = vector.broadcast %cst_3 : f32 to vector<16x4xf32>
    %16 = arith.select %14, %15, %12 : vector<16x4xi1>, vector<16x4xf32>
    %17 = tpu.concatenate %9, %1, %16 in 1 : vector<16x4xf32>, vector<16x4xf32>, vector<16x4xf32> -> vector<16x12xf32>
    %c0_4 = arith.constant 0 : index
    %c0_5 = arith.constant 0 : index
    %18 = vector.load %arg5[%c0_4, %c0_5] : memref<12x32xf32, #tpu.memory_space<vmem>>, vector<12x32xf32>
    %cst_6 = arith.constant dense<0.000000e+00> : vector<16x32xf32>
    %19 = tpu.matmul %17, %18, %cst_6 {dimension_numbers = #tpu.dot_dimension_numbers<[1], [0], [0], [1], [0, 0, 1, 1], [], []>} : vector<16x12xf32>, vector<12x32xf32>, vector<16x32xf32> -> vector<16x32xf32>
    %c0_7 = arith.constant 0 : index
    %c0_8 = arith.constant 0 : index
    %c0_9 = arith.constant 0 : index
    %20 = vector.load %arg6[%c0_7, %c0_8, %c0_9] : memref<1x16x32xf32, #tpu.memory_space<vmem>>, vector<1x16x32xf32>
    %21 = vector.shape_cast %20 : vector<1x16x32xf32> to vector<16x32xf32>
    %22 = vector.shape_cast %19 : vector<16x32xf32> to vector<1x16x32xf32>
    tpu.vector_store %arg6[%c0_7, %c0_8, %c0_9], %22 {strides = array<i32>} : memref<1x16x32xf32, #tpu.memory_space<vmem>>, vector<1x16x32xf32>,
    %cst_10 = arith.constant dense<0.000000e+00> : vector<32xf32>
    %23 = vector.multi_reduction <add>, %19, %cst_10 [0] : vector<16x32xf32> to vector<32xf32>
    %24 = vector.shape_cast %23 : vector<32xf32> to vector<1x32xf32>
    %25 = arith.mulf %19, %19 : vector<16x32xf32>
    %cst_11 = arith.constant dense<0.000000e+00> : vector<32xf32>
    %26 = vector.multi_reduction <add>, %25, %cst_11 [0] : vector<16x32xf32> to vector<32xf32>
    %27 = vector.shape_cast %26 : vector<32xf32> to vector<1x32xf32>
    %28 = tpu.concatenate %24, %27 in 0 : vector<1x32xf32>, vector<1x32xf32> -> vector<2x32xf32>
    %c0_12 = arith.constant 0 : index
    %c0_13 = arith.constant 0 : index
    %c0_14 = arith.constant 0 : index
    %29 = vector.load %arg7[%c0_12, %c0_13, %c0_14] : memref<1x2x32xf32, #tpu.memory_space<vmem>>, vector<1x2x32xf32>
    %30 = vector.shape_cast %29 : vector<1x2x32xf32> to vector<2x32xf32>
    %31 = vector.shape_cast %28 : vector<2x32xf32> to vector<1x2x32xf32>
    tpu.vector_store %arg7[%c0_12, %c0_13, %c0_14], %31 {strides = array<i32>} : memref<1x2x32xf32, #tpu.memory_space<vmem>>, vector<1x2x32xf32>,
    return
  }
  func.func @transform_0(%arg0: i32, %arg1: i32) -> (i32, i32, i32) {
    %c0_i32 = arith.constant 0 : i32
    %c0_i32_0 = arith.constant 0 : i32
    %c0_i32_1 = arith.constant 0 : i32
    return %arg0, %c0_i32, %c0_i32_0 : i32, i32, i32
  }
  func.func @transform_1(%arg0: i32, %arg1: i32) -> (i32, i32) {
    %c0_i32 = arith.constant 0 : i32
    %c0_i32_0 = arith.constant 0 : i32
    %c0_i32_1 = arith.constant 0 : i32
    return %c0_i32, %c0_i32_0 : i32, i32
  }
  func.func @transform_2(%arg0: i32, %arg1: i32) -> (i32, i32) {
    %c0_i32 = arith.constant 0 : i32
    %c0_i32_0 = arith.constant 0 : i32
    %c0_i32_1 = arith.constant 0 : i32
    return %c0_i32, %c0_i32_0 : i32, i32
  }
  func.func @transform_3(%arg0: i32, %arg1: i32) -> (i32, i32) {
    %c0_i32 = arith.constant 0 : i32
    %c0_i32_0 = arith.constant 0 : i32
    return %c0_i32, %arg1 : i32, i32
  }
  func.func @transform_4(%arg0: i32, %arg1: i32) -> (i32, i32, i32) {
    %c0_i32 = arith.constant 0 : i32
    %c0_i32_0 = arith.constant 0 : i32
    return %arg0, %c0_i32, %arg1 : i32, i32, i32
  }
  func.func @transform_5(%arg0: i32, %arg1: i32) -> (i32, i32, i32) {
    %c0_i32 = arith.constant 0 : i32
    %c0_i32_0 = arith.constant 0 : i32
    return %arg0, %c0_i32, %arg1 : i32, i32, i32
  }
}

module attributes {stable_mosaic.version = 11 : i64} {
  func.func @_conv3_stats_kernel(%arg0: i32, %arg1: i32, %arg2: memref<1x16x32xf32, #tpu.memory_space<vmem>>, %arg3: memref<1x32xf32, #tpu.memory_space<vmem>>, %arg4: memref<1x32xf32, #tpu.memory_space<vmem>>, %arg5: memref<96x32xf32, #tpu.memory_space<vmem>>, %arg6: memref<1x16x32xf32, #tpu.memory_space<vmem>>, %arg7: memref<1x2x32xf32, #tpu.memory_space<vmem>>) attributes {dimension_semantics = [#tpu.dimension_semantics<parallel>, #tpu.dimension_semantics<parallel>], iteration_bounds = array<i64: 2, 1>, scalar_prefetch = 0 : i64, scratch_operands = 0 : i64, tpu.core_type = #tpu.core_type<tc>, window_params = [{transform_indices = @transform_0, window_bounds = array<i64: 1, 16, 32>}, {pipeline_mode = #tpu.pipeline_mode<synchronous>, transform_indices = @transform_1, window_bounds = array<i64: 1, 32>}, {pipeline_mode = #tpu.pipeline_mode<synchronous>, transform_indices = @transform_2, window_bounds = array<i64: 1, 32>}, {transform_indices = @transform_3, window_bounds = array<i64: 96, 32>}, {transform_indices = @transform_4, window_bounds = array<i64: 1, 16, 32>}, {transform_indices = @transform_5, window_bounds = array<i64: 1, 2, 32>}]} {
    %c0 = arith.constant 0 : index
    %c0_0 = arith.constant 0 : index
    %c0_1 = arith.constant 0 : index
    %0 = vector.load %arg2[%c0, %c0_0, %c0_1] : memref<1x16x32xf32, #tpu.memory_space<vmem>>, vector<1x16x32xf32>
    %1 = vector.shape_cast %0 : vector<1x16x32xf32> to vector<16x32xf32>
    %c0_2 = arith.constant 0 : index
    %c0_3 = arith.constant 0 : index
    %2 = vector.load %arg3[%c0_2, %c0_3] : memref<1x32xf32, #tpu.memory_space<vmem>>, vector<1x32xf32>
    %3 = vector.broadcast %2 : vector<1x32xf32> to vector<16x32xf32>
    %4 = arith.mulf %1, %3 : vector<16x32xf32>
    %c0_4 = arith.constant 0 : index
    %c0_5 = arith.constant 0 : index
    %5 = vector.load %arg4[%c0_4, %c0_5] : memref<1x32xf32, #tpu.memory_space<vmem>>, vector<1x32xf32>
    %6 = vector.broadcast %5 : vector<1x32xf32> to vector<16x32xf32>
    %7 = arith.addf %4, %6 : vector<16x32xf32>
    %cst = arith.constant 0.000000e+00 : f32
    %8 = vector.broadcast %cst : f32 to vector<16x32xf32>
    %9 = arith.maximumf %7, %8 : vector<16x32xf32>
    %10 = tpu.iota {dimensions = array<i32: 0>} : vector<16x1xi32>
    %c0_i32 = arith.constant 0 : i32
    %11 = vector.broadcast %c0_i32 : i32 to vector<16x1xi32>
    %12 = arith.cmpi eq, %10, %11 : vector<16x1xi32>
    %c1_i32 = arith.constant 1 : i32
    %13 = tpu.dynamic_rotate %9 by %c1_i32 dim 0 : vector<16x32xf32>, i32 -> vector<16x32xf32>
    %cst_6 = arith.constant 0.000000e+00 : f32
    %14 = vector.shape_cast %12 : vector<16x1xi1> to vector<16x1xi1>
    %15 = vector.broadcast %14 : vector<16x1xi1> to vector<16x32xi1>
    %16 = vector.broadcast %cst_6 : f32 to vector<16x32xf32>
    %17 = arith.select %15, %16, %13 : vector<16x32xi1>, vector<16x32xf32>
    %c15_i32 = arith.constant 15 : i32
    %18 = vector.broadcast %c15_i32 : i32 to vector<16x1xi32>
    %19 = arith.cmpi eq, %10, %18 : vector<16x1xi32>
    %c15_i32_7 = arith.constant 15 : i32
    %20 = tpu.dynamic_rotate %9 by %c15_i32_7 dim 0 : vector<16x32xf32>, i32 -> vector<16x32xf32>
    %cst_8 = arith.constant 0.000000e+00 : f32
    %21 = vector.shape_cast %19 : vector<16x1xi1> to vector<16x1xi1>
    %22 = vector.broadcast %21 : vector<16x1xi1> to vector<16x32xi1>
    %23 = vector.broadcast %cst_8 : f32 to vector<16x32xf32>
    %24 = arith.select %22, %23, %20 : vector<16x32xi1>, vector<16x32xf32>
    %25 = tpu.concatenate %17, %9, %24 in 1 : vector<16x32xf32>, vector<16x32xf32>, vector<16x32xf32> -> vector<16x96xf32>
    %c0_9 = arith.constant 0 : index
    %c0_10 = arith.constant 0 : index
    %26 = vector.load %arg5[%c0_9, %c0_10] : memref<96x32xf32, #tpu.memory_space<vmem>>, vector<96x32xf32>
    %cst_11 = arith.constant dense<0.000000e+00> : vector<16x32xf32>
    %27 = tpu.matmul %25, %26, %cst_11 {dimension_numbers = #tpu.dot_dimension_numbers<[1], [0], [0], [1], [0, 0, 1, 1], [], []>} : vector<16x96xf32>, vector<96x32xf32>, vector<16x32xf32> -> vector<16x32xf32>
    %c0_12 = arith.constant 0 : index
    %c0_13 = arith.constant 0 : index
    %c0_14 = arith.constant 0 : index
    %28 = vector.load %arg6[%c0_12, %c0_13, %c0_14] : memref<1x16x32xf32, #tpu.memory_space<vmem>>, vector<1x16x32xf32>
    %29 = vector.shape_cast %28 : vector<1x16x32xf32> to vector<16x32xf32>
    %30 = vector.shape_cast %27 : vector<16x32xf32> to vector<1x16x32xf32>
    tpu.vector_store %arg6[%c0_12, %c0_13, %c0_14], %30 {strides = array<i32>} : memref<1x16x32xf32, #tpu.memory_space<vmem>>, vector<1x16x32xf32>,
    %cst_15 = arith.constant dense<0.000000e+00> : vector<32xf32>
    %31 = vector.multi_reduction <add>, %27, %cst_15 [0] : vector<16x32xf32> to vector<32xf32>
    %32 = vector.shape_cast %31 : vector<32xf32> to vector<1x32xf32>
    %33 = arith.mulf %27, %27 : vector<16x32xf32>
    %cst_16 = arith.constant dense<0.000000e+00> : vector<32xf32>
    %34 = vector.multi_reduction <add>, %33, %cst_16 [0] : vector<16x32xf32> to vector<32xf32>
    %35 = vector.shape_cast %34 : vector<32xf32> to vector<1x32xf32>
    %36 = tpu.concatenate %32, %35 in 0 : vector<1x32xf32>, vector<1x32xf32> -> vector<2x32xf32>
    %c0_17 = arith.constant 0 : index
    %c0_18 = arith.constant 0 : index
    %c0_19 = arith.constant 0 : index
    %37 = vector.load %arg7[%c0_17, %c0_18, %c0_19] : memref<1x2x32xf32, #tpu.memory_space<vmem>>, vector<1x2x32xf32>
    %38 = vector.shape_cast %37 : vector<1x2x32xf32> to vector<2x32xf32>
    %39 = vector.shape_cast %36 : vector<2x32xf32> to vector<1x2x32xf32>
    tpu.vector_store %arg7[%c0_17, %c0_18, %c0_19], %39 {strides = array<i32>} : memref<1x2x32xf32, #tpu.memory_space<vmem>>, vector<1x2x32xf32>,
    return
  }
  func.func @transform_0(%arg0: i32, %arg1: i32) -> (i32, i32, i32) {
    %c0_i32 = arith.constant 0 : i32
    %c0_i32_0 = arith.constant 0 : i32
    %c0_i32_1 = arith.constant 0 : i32
    return %arg0, %c0_i32, %c0_i32_0 : i32, i32, i32
  }
  func.func @transform_1(%arg0: i32, %arg1: i32) -> (i32, i32) {
    %c0_i32 = arith.constant 0 : i32
    %c0_i32_0 = arith.constant 0 : i32
    %c0_i32_1 = arith.constant 0 : i32
    return %c0_i32, %c0_i32_0 : i32, i32
  }
  func.func @transform_2(%arg0: i32, %arg1: i32) -> (i32, i32) {
    %c0_i32 = arith.constant 0 : i32
    %c0_i32_0 = arith.constant 0 : i32
    %c0_i32_1 = arith.constant 0 : i32
    return %c0_i32, %c0_i32_0 : i32, i32
  }
  func.func @transform_3(%arg0: i32, %arg1: i32) -> (i32, i32) {
    %c0_i32 = arith.constant 0 : i32
    %c0_i32_0 = arith.constant 0 : i32
    return %c0_i32, %arg1 : i32, i32
  }
  func.func @transform_4(%arg0: i32, %arg1: i32) -> (i32, i32, i32) {
    %c0_i32 = arith.constant 0 : i32
    %c0_i32_0 = arith.constant 0 : i32
    return %arg0, %c0_i32, %arg1 : i32, i32, i32
  }
  func.func @transform_5(%arg0: i32, %arg1: i32) -> (i32, i32, i32) {
    %c0_i32 = arith.constant 0 : i32
    %c0_i32_0 = arith.constant 0 : i32
    return %arg0, %c0_i32, %arg1 : i32, i32, i32
  }
}

module attributes {stable_mosaic.version = 11 : i64} {
  func.func @_bn_relu_pool_kernel(%arg0: i32, %arg1: i32, %arg2: memref<1x16x32xf32, #tpu.memory_space<vmem>>, %arg3: memref<1x32xf32, #tpu.memory_space<vmem>>, %arg4: memref<1x32xf32, #tpu.memory_space<vmem>>, %arg5: memref<1x16x32xf32, #tpu.memory_space<vmem>>, %arg6: memref<1x8x32xf32, #tpu.memory_space<vmem>>) attributes {dimension_semantics = [#tpu.dimension_semantics<parallel>, #tpu.dimension_semantics<parallel>], iteration_bounds = array<i64: 2, 1>, scalar_prefetch = 0 : i64, scratch_operands = 0 : i64, tpu.core_type = #tpu.core_type<tc>, window_params = [{transform_indices = @transform_0, window_bounds = array<i64: 1, 16, 32>}, {transform_indices = @transform_1, window_bounds = array<i64: 1, 32>}, {transform_indices = @transform_2, window_bounds = array<i64: 1, 32>}, {transform_indices = @transform_3, window_bounds = array<i64: 1, 16, 32>}, {transform_indices = @transform_4, window_bounds = array<i64: 1, 8, 32>}]} {
    %c0 = arith.constant 0 : index
    %c0_0 = arith.constant 0 : index
    %c0_1 = arith.constant 0 : index
    %0 = vector.load %arg2[%c0, %c0_0, %c0_1] : memref<1x16x32xf32, #tpu.memory_space<vmem>>, vector<1x16x32xf32>
    %1 = vector.shape_cast %0 : vector<1x16x32xf32> to vector<16x32xf32>
    %c0_2 = arith.constant 0 : index
    %c0_3 = arith.constant 0 : index
    %2 = vector.load %arg3[%c0_2, %c0_3] : memref<1x32xf32, #tpu.memory_space<vmem>>, vector<1x32xf32>
    %3 = vector.broadcast %2 : vector<1x32xf32> to vector<16x32xf32>
    %4 = arith.mulf %1, %3 : vector<16x32xf32>
    %c0_4 = arith.constant 0 : index
    %c0_5 = arith.constant 0 : index
    %5 = vector.load %arg4[%c0_4, %c0_5] : memref<1x32xf32, #tpu.memory_space<vmem>>, vector<1x32xf32>
    %6 = vector.broadcast %5 : vector<1x32xf32> to vector<16x32xf32>
    %7 = arith.addf %4, %6 : vector<16x32xf32>
    %cst = arith.constant 0.000000e+00 : f32
    %8 = vector.broadcast %cst : f32 to vector<16x32xf32>
    %9 = arith.maximumf %7, %8 : vector<16x32xf32>
    %c0_6 = arith.constant 0 : index
    %c0_7 = arith.constant 0 : index
    %c0_8 = arith.constant 0 : index
    %10 = vector.load %arg5[%c0_6, %c0_7, %c0_8] : memref<1x16x32xf32, #tpu.memory_space<vmem>>, vector<1x16x32xf32>
    %11 = vector.shape_cast %10 : vector<1x16x32xf32> to vector<16x32xf32>
    %12 = vector.shape_cast %9 : vector<16x32xf32> to vector<1x16x32xf32>
    tpu.vector_store %arg5[%c0_6, %c0_7, %c0_8], %12 {strides = array<i32>} : memref<1x16x32xf32, #tpu.memory_space<vmem>>, vector<1x16x32xf32>,
    %13 = vector.shape_cast %9 : vector<16x32xf32> to vector<8x2x32xf32>
    %14 = vector.extract_strided_slice %13 {offsets = [0, 0, 0], sizes = [8, 1, 32], strides = [1, 1, 1]} : vector<8x2x32xf32> to vector<8x1x32xf32>
    %15 = vector.shape_cast %14 : vector<8x1x32xf32> to vector<8x32xf32>
    %16 = vector.extract_strided_slice %13 {offsets = [0, 1, 0], sizes = [8, 1, 32], strides = [1, 1, 1]} : vector<8x2x32xf32> to vector<8x1x32xf32>
    %17 = vector.shape_cast %16 : vector<8x1x32xf32> to vector<8x32xf32>
    %18 = arith.maximumf %15, %17 : vector<8x32xf32>
    %c0_9 = arith.constant 0 : index
    %c0_10 = arith.constant 0 : index
    %c0_11 = arith.constant 0 : index
    %19 = vector.load %arg6[%c0_9, %c0_10, %c0_11] : memref<1x8x32xf32, #tpu.memory_space<vmem>>, vector<1x8x32xf32>
    %20 = vector.shape_cast %19 : vector<1x8x32xf32> to vector<8x32xf32>
    %21 = vector.shape_cast %18 : vector<8x32xf32> to vector<1x8x32xf32>
    tpu.vector_store %arg6[%c0_9, %c0_10, %c0_11], %21 {strides = array<i32>} : memref<1x8x32xf32, #tpu.memory_space<vmem>>, vector<1x8x32xf32>,
    return
  }
  func.func @transform_0(%arg0: i32, %arg1: i32) -> (i32, i32, i32) {
    %c0_i32 = arith.constant 0 : i32
    %c0_i32_0 = arith.constant 0 : i32
    return %arg0, %c0_i32, %arg1 : i32, i32, i32
  }
  func.func @transform_1(%arg0: i32, %arg1: i32) -> (i32, i32) {
    %c0_i32 = arith.constant 0 : i32
    %c0_i32_0 = arith.constant 0 : i32
    return %c0_i32, %arg1 : i32, i32
  }
  func.func @transform_2(%arg0: i32, %arg1: i32) -> (i32, i32) {
    %c0_i32 = arith.constant 0 : i32
    %c0_i32_0 = arith.constant 0 : i32
    return %c0_i32, %arg1 : i32, i32
  }
  func.func @transform_3(%arg0: i32, %arg1: i32) -> (i32, i32, i32) {
    %c0_i32 = arith.constant 0 : i32
    %c0_i32_0 = arith.constant 0 : i32
    return %arg0, %c0_i32, %arg1 : i32, i32, i32
  }
  func.func @transform_4(%arg0: i32, %arg1: i32) -> (i32, i32, i32) {
    %c0_i32 = arith.constant 0 : i32
    %c0_i32_0 = arith.constant 0 : i32
    return %arg0, %c0_i32, %arg1 : i32, i32, i32
  }
}

</mosaic_0001>

<llo_original>
// kernel: encoder_block_forward.3
$region0: #{encoder_block_forward.3}
  #allocation0 [shape = 'u32[]', space=smem, size = 0x4, offset = 0x4, fixed_abs, tag = 'smem constant byte address 0x4 - core index']
  #allocation1 [shape = 'u32[144,128]{1,0:T(1,128)}', space=vmem, size = 0x12000, scoped, tag = 'internal scratch']
  %s0 = inlined_call_operand.vmem [shape: f32[2,16,4], index: 0, kind: input, shape index: {}]
  %s1 = inlined_call_operand.vmem [shape: f32[1,4], index: 1, kind: input, shape index: {}]
  %s2 = inlined_call_operand.vmem [shape: f32[1,4], index: 2, kind: input, shape index: {}]
  %s3 = inlined_call_operand.vmem [shape: f32[12,32], index: 3, kind: input, shape index: {}]
  %s4 = inlined_call_operand.vmem [shape: f32[2,16,32], index: 4, kind: output, shape index: {0}]
  %s5 = inlined_call_operand.vmem [shape: f32[2,2,32], index: 5, kind: output, shape index: {1}]
  %6 = xla_tuple %s4, %s5
  %s7 = sld [smem:[#allocation0]]
  $region57: #{encoder_block_forward.3} parent=0
    _
  %s9 = ssub.s32 1, %s7
  %s10 = scalar_select 0, %s9, %s7
  loop: start=0, step=1, limit=4
  $region2: #{encoder_block_forward.3} parent=0 // loop_pre_header
    _
  $region3: #{encoder_block_forward.3} parent=0 // loop_header
    %s12 = sphi 0, %s16
    %p13 = scmp.ge.s32.totalorder %s12, 4
    %s19 = sphi 0, %s31
    %s20 = sphi 0, %s27
    %s21 = sphi 0, %s19
    %s22 = sphi 0, %s20
    %s23 = sphi 0, %s21
    %s24 = sphi 0, %s22
    %s34 = sphi 0, %s36
    %s37 = sphi 0, %s34
    %s38 = sphi 0, %s37
    %s54 = sphi 0, %s38
    %s58 = sphi 0, %s58
    %s60 = sphi 0, %s58
    %s61 = sphi 0, %s60
    %s75 = sphi 0, %s61
    %s79 = sphi 0, %s79
    %s81 = sphi 0, %s79
    %s82 = sphi 0, %s81
    %s96 = sphi 0, %s82
    %s102 = sphi 0, %s104
    %s105 = sphi 0, %s102
    %s106 = sphi 0, %s105
    %s122 = sphi 0, %s106
    %s130 = sphi 0, %s132
    %s133 = sphi 0, %s130
    %s134 = sphi 0, %s133
    %s150 = sphi 0, %s134
    %s158 = sphi 0, %s160
    %s161 = sphi 0, %s158
    %s162 = sphi 0, %s161
    %s178 = sphi 0, %s162
  $region4: #{encoder_block_forward.3} parent=0 // loop_header_branch
    %15 = sbr.rel (%p13) target = $region8
  $region5: #{encoder_block_forward.3} parent=0 // loop_body
    %s17 = ssub.s32 %s12, 1
    %s18 = ssub.s32 %s12, 2
    %s25 = sadd.s32 1, %s20
    %p26 = scmp.ge.s32.totalorder %s25, 1
    %s27 = scalar_select %p26, 0, %s25
    %s28 = sadd.s32 1, %s19
    %s29 = scalar_select %p26, %s28, %s19
    %p30 = scmp.ge.s32.totalorder %s29, 2
    %s31 = scalar_select %p30, 0, %s29
    %s32 = ssub.s32 %s19, %s31
    %p33 = scmp.eq.s32.totalorder %s32, 0
    %s35 = sadd.s32 %s34, 1
    %s36 = scalar_select %p33, %s34, %s35
    %p39 = pneg %p33
    %p40 = scmp.eq.s32.totalorder %s12, 1
    %p41 = por %p39, %p40
    %p42 = scmp.ne.s32.totalorder %s34, %s37
    %p43 = scmp.eq.s32.totalorder %s12, 0
    %p44 = por %p42, %p43
    %p45 = scmp.ne.s32.totalorder %s34, %s37
    %p46 = scmp.eq.s32.totalorder %s17, 1
    %p47 = por %p45, %p46
    %p48 = scmp.ne.s32.totalorder %s37, %s38
    %p49 = scmp.eq.s32.totalorder %s17, 0
    %p50 = por %p48, %p49
    %p51 = scmp.ne.s32.totalorder %s37, %s38
    %p52 = scmp.eq.s32.totalorder %s18, 1
    %p53 = por %p51, %p52
    %p55 = scmp.ne.s32.totalorder %s38, %s54
    %p56 = scmp.eq.s32.totalorder %s18, 0
    %p57 = por %p55, %p56
    %s59 = sadd.s32 %s58, 1
    %p62 = scmp.eq.s32.totalorder %s12, 1
    %p63 = scmp.ne.s32.totalorder %s58, %s60
    %p64 = scmp.eq.s32.totalorder %s12, 0
    %p65 = por %p63, %p64
    %p66 = scmp.ne.s32.totalorder %s58, %s60
    %p67 = scmp.eq.s32.totalorder %s17, 1
    %p68 = por %p66, %p67
    %p69 = scmp.ne.s32.totalorder %s60, %s61
    %p70 = scmp.eq.s32.totalorder %s17, 0
    %p71 = por %p69, %p70
    %p72 = scmp.ne.s32.totalorder %s60, %s61
    %p73 = scmp.eq.s32.totalorder %s18, 1
    %p74 = por %p72, %p73
    %p76 = scmp.ne.s32.totalorder %s61, %s75
    %p77 = scmp.eq.s32.totalorder %s18, 0
    %p78 = por %p76, %p77
    %s80 = sadd.s32 %s79, 1
    %p83 = scmp.eq.s32.totalorder %s12, 1
    %p84 = scmp.ne.s32.totalorder %s79, %s81
    %p85 = scmp.eq.s32.totalorder %s12, 0
    %p86 = por %p84, %p85
    %p87 = scmp.ne.s32.totalorder %s79, %s81
    %p88 = scmp.eq.s32.totalorder %s17, 1
    %p89 = por %p87, %p88
    %p90 = scmp.ne.s32.totalorder %s81, %s82
    %p91 = scmp.eq.s32.totalorder %s17, 0
    %p92 = por %p90, %p91
    %p93 = scmp.ne.s32.totalorder %s81, %s82
    %p94 = scmp.eq.s32.totalorder %s18, 1
    %p95 = por %p93, %p94
    %p97 = scmp.ne.s32.totalorder %s82, %s96
    %p98 = scmp.eq.s32.totalorder %s18, 0
    %p99 = por %p97, %p98
    %s100 = ssub.s32 %s20, %s27
    %p101 = scmp.eq.s32.totalorder %s100, 0
    %s103 = sadd.s32 %s102, 1
    %s104 = scalar_select %p101, %s102, %s103
    %p107 = pneg %p101
    %p108 = scmp.eq.s32.totalorder %s12, 1
    %p109 = por %p107, %p108
    %p110 = scmp.ne.s32.totalorder %s102, %s105
    %p111 = scmp.eq.s32.totalorder %s12, 0
    %p112 = por %p110, %p111
    %p113 = scmp.ne.s32.totalorder %s102, %s105
    %p114 = scmp.eq.s32.totalorder %s17, 1
    %p115 = por %p113, %p114
    %p116 = scmp.ne.s32.totalorder %s105, %s106
    %p117 = scmp.eq.s32.totalorder %s17, 0
    %p118 = por %p116, %p117
    %p119 = scmp.ne.s32.totalorder %s105, %s106
    %p120 = scmp.eq.s32.totalorder %s18, 1
    %p121 = por %p119, %p120
    %p123 = scmp.ne.s32.totalorder %s106, %s122
    %p124 = scmp.eq.s32.totalorder %s18, 0
    %p125 = por %p123, %p124
    %s126 = ssub.s32 %s19, %s31
    %s127 = ssub.s32 %s20, %s27
    %s128 = sor.u32 %s126, %s127
    %p129 = scmp.eq.s32.totalorder %s128, 0
    %s131 = sadd.s32 %s130, 1
    %s132 = scalar_select %p129, %s130, %s131
    %p135 = pneg %p129
    %p136 = scmp.eq.s32.totalorder %s12, 1
    %p137 = por %p135, %p136
    %p138 = scmp.ne.s32.totalorder %s130, %s133
    %p139 = scmp.eq.s32.totalorder %s12, 0
    %p140 = por %p138, %p139
    %p141 = scmp.ne.s32.totalorder %s130, %s133
    %p142 = scmp.eq.s32.totalorder %s17, 1
    %p143 = por %p141, %p142
    %p144 = scmp.ne.s32.totalorder %s133, %s134
    %p145 = scmp.eq.s32.totalorder %s17, 0
    %p146 = por %p144, %p145
    %p147 = scmp.ne.s32.totalorder %s133, %s134
    %p148 = scmp.eq.s32.totalorder %s18, 1
    %p149 = por %p147, %p148
    %p151 = scmp.ne.s32.totalorder %s134, %s150
    %p152 = scmp.eq.s32.totalorder %s18, 0
    %p153 = por %p151, %p152
    %s154 = ssub.s32 %s19, %s31
    %s155 = ssub.s32 %s20, %s27
    %s156 = sor.u32 %s154, %s155
    %p157 = scmp.eq.s32.totalorder %s156, 0
    %s159 = sadd.s32 %s158, 1
    %s160 = scalar_select %p157, %s158, %s159
    %p163 = pneg %p157
    %p164 = scmp.eq.s32.totalorder %s12, 1
    %p165 = por %p163, %p164
    %p166 = scmp.ne.s32.totalorder %s158, %s161
    %p167 = scmp.eq.s32.totalorder %s12, 0
    %p168 = por %p166, %p167
    %p169 = scmp.ne.s32.totalorder %s158, %s161
    %p170 = scmp.eq.s32.totalorder %s17, 1
    %p171 = por %p169, %p170
    %p172 = scmp.ne.s32.totalorder %s161, %s162
    %p173 = scmp.eq.s32.totalorder %s17, 0
    %p174 = por %p172, %p173
    %p175 = scmp.ne.s32.totalorder %s161, %s162
    %p176 = scmp.eq.s32.totalorder %s18, 1
    %p177 = por %p175, %p176
    %p179 = scmp.ne.s32.totalorder %s162, %s178
    %p180 = scmp.eq.s32.totalorder %s18, 0
    %p181 = por %p179, %p180
    %p182 = scmp.le.s32.totalorder 1, %s12
    %p183 = scmp.lt.s32.totalorder %s12, 3
    %p184 = pnand %p182, %p183
    %p185 = pneg %p184
    // Predicated region
    $region9: #{encoder_block_forward.3} parent=5 // pred_check
      _
    $region10: #{encoder_block_forward.3} parent=5 // pred_check_branch
      %187 = sbr.rel (%p184) target = $region12
    $region11: #{encoder_block_forward.3} parent=5 // pred_region
      %s188 = ssub.s32 %s12, 1
      // Predicated region
      $region13: #{encoder_block_forward.3} parent=11 // pred_check
        %p189 = pneg %p71
      $region14: #{encoder_block_forward.3} parent=11 // pred_check_branch
        %191 = sbr.rel (%p189) target = $region16
      $region15: #{encoder_block_forward.3} parent=11 // pred_region
        _
      $region16: #{encoder_block_forward.3} parent=11 // pred_fallthru
        _
      // Predicated region
      $region17: #{encoder_block_forward.3} parent=11 // pred_check
        %p192 = pneg %p92
      $region18: #{encoder_block_forward.3} parent=11 // pred_check_branch
        %194 = sbr.rel (%p192) target = $region20
      $region19: #{encoder_block_forward.3} parent=11 // pred_region
        _
      $region20: #{encoder_block_forward.3} parent=11 // pred_fallthru
        _
      // Predicated region
      $region21: #{encoder_block_forward.3} parent=11 // pred_check
        %p195 = pneg %p118
      $region22: #{encoder_block_forward.3} parent=11 // pred_check_branch
        %197 = sbr.rel (%p195) target = $region24
      $region23: #{encoder_block_forward.3} parent=11 // pred_region
        %p198 = scmp.lt.s32.totalorder %s22, 0
        %s199 = scalar_select %p198, %s22, 0
        %s200 = smul.addr %s199, 8
        %s201 = scalar_lea.vmem %s3, %s200
      $region24: #{encoder_block_forward.3} parent=11 // pred_fallthru
        _
    $region12: #{encoder_block_forward.3} parent=5 // pred_fallthru
      _
    %p202 = scmp.lt.s32.totalorder %s12, 2
    // Predicated region
    $region25: #{encoder_block_forward.3} parent=5 // pred_check
      %p203 = pneg %p202
    $region26: #{encoder_block_forward.3} parent=5 // pred_check_branch
      %205 = sbr.rel (%p203) target = $region28
    $region27: #{encoder_block_forward.3} parent=5 // pred_region
      // Predicated region
      $region29: #{encoder_block_forward.3} parent=27 // pred_check
        %p206 = pneg %p44
      $region30: #{encoder_block_forward.3} parent=27 // pred_check_branch
        %208 = sbr.rel (%p206) target = $region32
      $region31: #{encoder_block_forward.3} parent=27 // pred_region
        %p209 = scmp.lt.s32.totalorder %s19, 1
        %s210 = scalar_select %p209, %s19, 1
        %s211 = smul.addr %s210, 2
        %s212 = smul.addr %s211, 8
        %s213 = scalar_lea.vmem %s0, %s212
      $region32: #{encoder_block_forward.3} parent=27 // pred_fallthru
        _
    $region28: #{encoder_block_forward.3} parent=5 // pred_fallthru
      _
    %p214 = scmp.le.s32.totalorder 1, %s12
    %p215 = scmp.lt.s32.totalorder %s12, 3
    %p216 = pnand %p214, %p215
    %p217 = pneg %p216
    // Predicated region
    $region33: #{encoder_block_forward.3} parent=5 // pred_check
      _
    $region34: #{encoder_block_forward.3} parent=5 // pred_check_branch
      %219 = sbr.rel (%p216) target = $region36
    $region35: #{encoder_block_forward.3} parent=5 // pred_region
      %s220 = ssub.s32 %s12, 1
      %p221 = scmp.lt.s32.totalorder %s21, 1
      %s222 = scalar_select %p221, %s21, 1
      %s223 = smul.addr %s222, 2
      %s224 = smul.addr %s223, 8
      %s225 = scalar_lea.vmem %s0, %s224
      %p226 = pneg %p50
      %p227 = pneg %p47
      %p228 = pneg %p71
      %p229 = pneg %p68
      %p230 = pneg %p92
      %p231 = pneg %p89
      %p232 = scmp.lt.s32.totalorder %s22, 0
      %s233 = scalar_select %p232, %s22, 0
      %s234 = smul.addr %s233, 8
      %s235 = scalar_lea.vmem %s3, %s234
      %p236 = pneg %p118
      %p237 = pneg %p115
      %p238 = pneg %p146
      %p239 = pneg %p143
      %p240 = scmp.lt.s32.totalorder %s21, 1
      %s241 = scalar_select %p240, %s21, 1
      %p242 = scmp.lt.s32.totalorder %s22, 0
      %s243 = scalar_select %p242, %s22, 0
      %s244 = smul.addr %s241, 2
      %s245 = sadd.s32 %s243, %s244
      %s246 = smul.addr %s245, 8
      %s247 = scalar_lea.vmem %s4, %s246
      %p248 = pneg %p174
      %p249 = pneg %p171
      %p250 = scmp.lt.s32.totalorder %s21, 1
      %s251 = scalar_select %p250, %s21, 1
      %p252 = scmp.lt.s32.totalorder %s22, 0
      %s253 = scalar_select %p252, %s22, 0
      %s254 = sadd.s32 %s253, %s251
      %s255 = smul.addr %s254, 2
      %s256 = scalar_lea.vmem %s5, %s255
      %p257 = scmp.lt.s32.totalorder %s21, 1
      %s258 = scalar_select %p257, %s21, 1
      %s259 = smul.addr %s258, 2
      %s260 = smul.addr %s259, 8
      %s261 = scalar_lea.vmem %s0, %s260
      %p262 = scmp.lt.s32.totalorder %s22, 0
      %s263 = scalar_select %p262, %s22, 0
      %s264 = smul.addr %s263, 8
      %s265 = scalar_lea.vmem %s3, %s264
      %p266 = scmp.lt.s32.totalorder %s21, 1
      %s267 = scalar_select %p266, %s21, 1
      %p268 = scmp.lt.s32.totalorder %s22, 0
      %s269 = scalar_select %p268, %s22, 0
      %s270 = smul.addr %s267, 2
      %s271 = sadd.s32 %s269, %s270
      %s272 = smul.addr %s271, 8
      %s273 = scalar_lea.vmem %s4, %s272
      %p274 = scmp.lt.s32.totalorder %s21, 1
      %s275 = scalar_select %p274, %s21, 1
      %p276 = scmp.lt.s32.totalorder %s22, 0
      %s277 = scalar_select %p276, %s22, 0
      %s278 = sadd.s32 %s277, %s275
      %s279 = smul.addr %s278, 2
      %s280 = scalar_lea.vmem %s5, %s279
      %v281 = vld [vmem:[%s261] sm:$0xff]
      %v282 = vld [vmem:[%s261 + $0x8] sm:$0xff]
      %v283 = vlaneseq
      %v284 = vshrl.u32 %v283, 7
      %v285 = vadd.s32 %v284, 8
      %vm286 = vcmp.eq.s32.totalorder %v284, 0
      %vm287 = vcmp.eq.s32.totalorder %v285, 0
      %v288 = vrot.slane %v281, 7
      %v289 = vrot.slane %v282, 7
      %vm290 = vcmp.lt.s32.totalorder %v284, 1
      %v291 = vsel %vm290, %v288, %v289
      %v292 = vsel %vm290, %v289, %v288
      %v293 = vsel %vm286, 1, 0
      %v294 = vsel %vm287, 1, 0
      %vm295 = vcmp.eq.s32.totalorder %v293, 1
      %vm296 = vcmp.eq.s32.totalorder %v294, 1
      %v297 = vsel %vm295, 0.0, %v292
      %v298 = vsel %vm296, 0.0, %v291
      %vm299 = vcmp.eq.s32.totalorder %v284, 15
      %vm300 = vcmp.eq.s32.totalorder %v285, 15
      %v301 = vrot.slane %v281, 1
      %v302 = vrot.slane %v282, 1
      %vm303 = vcmp.lt.s32.totalorder %v284, 7
      %v304 = vsel %vm303, %v301, %v302
      %v305 = vsel %vm303, %v302, %v301
      %v306 = vsel %vm299, 1, 0
      %v307 = vsel %vm300, 1, 0
      %vm308 = vcmp.eq.s32.totalorder %v306, 1
      %vm309 = vcmp.eq.s32.totalorder %v307, 1
      %v310 = vsel %vm308, 0.0, %v304
      %v311 = vsel %vm309, 0.0, %v305
      %314 = vrot.lane.b32.xlu0 %v281, 4
      %v315 = vpop.permute.xlu0 %314
      %316 = vrot.lane.b32.xlu0 %v282, 4
      %v317 = vpop.permute.xlu0 %316
      %322 = vrot.lane.b32.xlu0 %v310, 8
      %v323 = vpop.permute.xlu0 %322
      %324 = vrot.lane.b32.xlu0 %v311, 8
      %v325 = vpop.permute.xlu0 %324
      %vm328 = vcmask 31744
      %v329 = vsel %vm328, %v297, %v315
      %v330 = vsel %vm328, %v298, %v317
      %vm331 = vcmask 64512
      %v332 = vsel %vm331, %v329, %v323
      %v333 = vsel %vm331, %v330, %v325
      %v334 = vld [vmem:[%s265] sm:$0xff]
      %v335 = vld [vmem:[%s265 + $0x8] sm:$0xf]
      %vm336 = vcmask 97280
      %v338 = vsel %vm336, %v332, 0
      %v341 = vsel %vm336, %v333, 0
      %vm343 = vcmask 1043456
      %v345 = vsel %vm343, %v335, 0
      %347 = vmatprep.subr.mxu0 0.0
      %348 = vmatpush1.msra.mxu0 %v334
      %349 = vmatprep.subr.mxu0 0.0
      %350 = vmatpush1.msra.mxu0 %v345
      %351 = vmatprep.subr.mxu0 0.0
      %352 = vmatpush1.msra.mxu0 0.0
      %353 = vmatprep.subr.mxu0 0.0
      %354 = vmatpush1.msra.mxu0 0.0
      %355 = vmatprep.subr.mxu0 0.0
      %356 = vmatpush1.msra.mxu0 0.0
      %357 = vmatprep.subr.mxu0 0.0
      %358 = vmatpush1.msra.mxu0 0.0
      %359 = vmatprep.subr.mxu0 0.0
      %360 = vmatpush1.msra.mxu0 0.0
      %361 = vmatprep.subr.mxu0 0.0
      %362 = vmatpush1.msra.mxu0 0.0
      %363 = vmatprep.subr.mxu0 0.0
      %364 = vmatpush1.msra.mxu0 0.0
      %365 = vmatprep.subr.mxu0 0.0
      %366 = vmatpush1.msra.mxu0 0.0
      %367 = vmatprep.subr.mxu0 0.0
      %368 = vmatpush1.msra.mxu0 0.0
      %369 = vmatprep.subr.mxu0 0.0
      %370 = vmatpush1.msra.mxu0 0.0
      %371 = vmatprep.subr.mxu0 0.0
      %372 = vmatpush1.msra.mxu0 0.0
      %373 = vmatprep.subr.mxu0 0.0
      %374 = vmatpush1.msra.mxu0 0.0
      %375 = vmatprep.subr.mxu0 0.0
      %376 = vmatpush1.msra.mxu0 0.0
      %377 = vmatprep.subr.mxu0 0.0
      %378 = vmatpush1.msra.mxu0 0.0
      %379 = vmatprep.subr.mxu0 0.0
      %380 = vmatpush1.msra.mxu0 0.0
      %381 = vmatprep.subr.mxu0 0.0
      %382 = vmatpush1.msra.mxu0 0.0
      %383 = vmatprep.subr.mxu0 0.0
      %384 = vmatpush1.msra.mxu0 0.0
      %385 = vmatprep.subr.mxu0 0.0
      %386 = vmatpush1.msra.mxu0 0.0
      %387 = vmatprep.subr.mxu0 0.0
      %388 = vmatpush1.msra.mxu0 0.0
      %389 = vmatprep.subr.mxu0 0.0
      %390 = vmatpush1.msra.mxu0 0.0
      %391 = vmatprep.subr.mxu0 0.0
      %392 = vmatpush1.msra.mxu0 0.0
      %393 = vmatprep.subr.mxu0 0.0
      %394 = vmatpush1.msra.mxu0 0.0
      %395 = vmatprep.subr.mxu0 0.0
      %396 = vmatpush1.msra.mxu0 0.0
      %397 = vmatprep.subr.mxu0 0.0
      %398 = vmatpush1.msra.mxu0 0.0
      %399 = vmatprep.subr.mxu0 0.0
      %400 = vmatpush1.msra.mxu0 0.0
      %401 = vmatprep.subr.mxu0 0.0
      %402 = vmatpush1.msra.mxu0 0.0
      %403 = vmatprep.subr.mxu0 0.0
      %404 = vmatpush1.msra.mxu0 0.0
      %405 = vmatprep.subr.mxu0 0.0
      %406 = vmatpush1.msra.mxu0 0.0
      %407 = vmatprep.subr.mxu0 0.0
      %408 = vmatpush1.msra.mxu0 0.0
      %409 = vmatprep.subr.mxu0 0.0
      %410 = vmatpush1.msra.mxu0 0.0
      %411 = vmatprep.mubr.f32.mxu0 0.0
      %412 = vmatmul.mubr.f32.gmra.mrb[0].mxu0 %v338
      %v413 = vpop.f32.mrb[0].mxu0
      %v414 = vadd.f32 0.0, %v413
      %v415 = vpop.f32.mrb[0].mxu0
      %416 = vmatprep.mubr.f32.mxu0 0.0
      %417 = vmatmul.mubr.f32.gmra.mrb[0].mxu0 %v341
      %v418 = vpop.f32.mrb[0].mxu0
      %v419 = vadd.f32 0.0, %v418
      %v420 = vpop.f32.mrb[0].mxu0
      %421 = vdwg.mxu0
      %vm422 = vcmask 261120
      %423 = vst.msk [vmem:[%s273] sm:$0xff] %vm422, %v414
      %424 = vst.msk [vmem:[%s273 + $0x8] sm:$0xff] %vm422, %v419
      %v425 = vsel %vm422, %v414, 0.0
      %v426 = vsel %vm422, %v419, 0.0
      %v427 = vadd.f32 %v425, %v426
      %v428 = vrot.slane %v427, 4
      %v429 = vadd.f32 %v427, %v428
      %v430 = vrot.slane %v429, 2
      %v431 = vadd.f32 %v429, %v430
      %v432 = vrot.slane %v431, 1
      %v433 = vadd.f32 %v431, %v432
      %v434 = vmul.f32 %v414, %v414
      %v435 = vmul.f32 %v419, %v419
      %v436 = vsel %vm422, %v434, 0.0
      %v437 = vsel %vm422, %v435, 0.0
      %v438 = vadd.f32 %v436, %v437
      %v439 = vrot.slane %v438, 4
      %v440 = vadd.f32 %v438, %v439
      %v441 = vrot.slane %v440, 2
      %v442 = vadd.f32 %v440, %v441
      %v443 = vrot.slane %v442, 1
      %v444 = vadd.f32 %v442, %v443
      %vm445 = vcmask 1040384
      %v446 = vsel %vm445, %v433, %v444
      %vm447 = vcmask 254976
      %448 = vst.msk [vmem:[%s280] sm:$0x3] %vm447, %v446
      %p449 = scmp.lt.s32.totalorder %s21, 1
      %s450 = scalar_select %p449, %s21, 1
      %p451 = scmp.lt.s32.totalorder %s22, 0
      %s452 = scalar_select %p451, %s22, 0
      %s453 = smul.addr %s450, 2
      %s454 = sadd.s32 %s452, %s453
      %s455 = smul.addr %s454, 8
      %s456 = scalar_lea.vmem %s4, %s455
      %p457 = scmp.lt.s32.totalorder %s21, 1
      %s458 = scalar_select %p457, %s21, 1
      %p459 = scmp.lt.s32.totalorder %s22, 0
      %s460 = scalar_select %p459, %s22, 0
      %s461 = sadd.s32 %s460, %s458
      %s462 = smul.addr %s461, 2
      %s463 = scalar_lea.vmem %s5, %s462
      // Predicated region
      $region37: #{encoder_block_forward.3} parent=35 // pred_check
        %p464 = pneg %p143
      $region38: #{encoder_block_forward.3} parent=35 // pred_check_branch
        %466 = sbr.rel (%p464) target = $region40
      $region39: #{encoder_block_forward.3} parent=35 // pred_region
        _
      $region40: #{encoder_block_forward.3} parent=35 // pred_fallthru
        _
      // Predicated region
      $region41: #{encoder_block_forward.3} parent=35 // pred_check
        %p467 = pneg %p171
      $region42: #{encoder_block_forward.3} parent=35 // pred_check_branch
        %469 = sbr.rel (%p467) target = $region44
      $region43: #{encoder_block_forward.3} parent=35 // pred_region
        _
      $region44: #{encoder_block_forward.3} parent=35 // pred_fallthru
        _
    $region36: #{encoder_block_forward.3} parent=5 // pred_fallthru
      _
    %p470 = scmp.le.s32.totalorder 2, %s12
    // Predicated region
    $region45: #{encoder_block_forward.3} parent=5 // pred_check
      %p471 = pneg %p470
    $region46: #{encoder_block_forward.3} parent=5 // pred_check_branch
      %473 = sbr.rel (%p471) target = $region48
    $region47: #{encoder_block_forward.3} parent=5 // pred_region
      %s474 = ssub.s32 %s12, 2
      // Predicated region
      $region49: #{encoder_block_forward.3} parent=47 // pred_check
        %p475 = pneg %p149
      $region50: #{encoder_block_forward.3} parent=47 // pred_check_branch
        %477 = sbr.rel (%p475) target = $region52
      $region51: #{encoder_block_forward.3} parent=47 // pred_region
        %p478 = scmp.lt.s32.totalorder %s23, 1
        %s479 = scalar_select %p478, %s23, 1
        %p480 = scmp.lt.s32.totalorder %s24, 0
        %s481 = scalar_select %p480, %s24, 0
        %s482 = smul.addr %s479, 2
        %s483 = sadd.s32 %s481, %s482
        %s484 = smul.addr %s483, 8
        %s485 = scalar_lea.vmem %s4, %s484
      $region52: #{encoder_block_forward.3} parent=47 // pred_fallthru
        _
      // Predicated region
      $region53: #{encoder_block_forward.3} parent=47 // pred_check
        %p486 = pneg %p177
      $region54: #{encoder_block_forward.3} parent=47 // pred_check_branch
        %488 = sbr.rel (%p486) target = $region56
      $region55: #{encoder_block_forward.3} parent=47 // pred_region
        %p489 = scmp.lt.s32.totalorder %s23, 1
        %s490 = scalar_select %p489, %s23, 1
        %p491 = scmp.lt.s32.totalorder %s24, 0
        %s492 = scalar_select %p491, %s24, 0
        %s493 = sadd.s32 %s492, %s490
        %s494 = smul.addr %s493, 2
        %s495 = scalar_lea.vmem %s5, %s494
      $region56: #{encoder_block_forward.3} parent=47 // pred_fallthru
        _
    $region48: #{encoder_block_forward.3} parent=5 // pred_fallthru
      _
  $region6: #{encoder_block_forward.3} parent=0 // loop_footer
    %s16 = sadd.s32 1, %s12
  $region7: #{encoder_block_forward.3} parent=0 // loop_footer_branch
    %11 = sbr.rel target = $region3
  $region8: #{encoder_block_forward.3} parent=0 // loop_exit
    _

// kernel: encoder_block_forward.4
$region0: #{encoder_block_forward.4}
  #allocation0 [shape = 'u32[]', space=smem, size = 0x4, offset = 0x4, fixed_abs, tag = 'smem constant byte address 0x4 - core index']
  #allocation1 [shape = 'u32[144,128]{1,0:T(1,128)}', space=vmem, size = 0x12000, scoped, tag = 'internal scratch']
  %s0 = inlined_call_operand.vmem [shape: f32[2,16,32], index: 0, kind: input, shape index: {}]
  %s1 = inlined_call_operand.vmem [shape: f32[1,32], index: 1, kind: input, shape index: {}]
  %s2 = inlined_call_operand.vmem [shape: f32[1,32], index: 2, kind: input, shape index: {}]
  %s3 = inlined_call_operand.vmem [shape: f32[96,32], index: 3, kind: input, shape index: {}]
  %s4 = inlined_call_operand.vmem [shape: f32[2,16,32], index: 4, kind: output, shape index: {0}]
  %s5 = inlined_call_operand.vmem [shape: f32[2,2,32], index: 5, kind: output, shape index: {1}]
  %6 = xla_tuple %s4, %s5
  %s7 = sld [smem:[#allocation0]]
  $region57: #{encoder_block_forward.4} parent=0
    _
  %s9 = ssub.s32 1, %s7
  %s10 = scalar_select 0, %s9, %s7
  loop: start=0, step=1, limit=4
  $region2: #{encoder_block_forward.4} parent=0 // loop_pre_header
    _
  $region3: #{encoder_block_forward.4} parent=0 // loop_header
    %s12 = sphi 0, %s16
    %p13 = scmp.ge.s32.totalorder %s12, 4
    %s19 = sphi 0, %s31
    %s20 = sphi 0, %s27
    %s21 = sphi 0, %s19
    %s22 = sphi 0, %s20
    %s23 = sphi 0, %s21
    %s24 = sphi 0, %s22
    %s34 = sphi 0, %s36
    %s37 = sphi 0, %s34
    %s38 = sphi 0, %s37
    %s54 = sphi 0, %s38
    %s58 = sphi 0, %s58
    %s60 = sphi 0, %s58
    %s61 = sphi 0, %s60
    %s75 = sphi 0, %s61
    %s79 = sphi 0, %s79
    %s81 = sphi 0, %s79
    %s82 = sphi 0, %s81
    %s96 = sphi 0, %s82
    %s102 = sphi 0, %s104
    %s105 = sphi 0, %s102
    %s106 = sphi 0, %s105
    %s122 = sphi 0, %s106
    %s130 = sphi 0, %s132
    %s133 = sphi 0, %s130
    %s134 = sphi 0, %s133
    %s150 = sphi 0, %s134
    %s158 = sphi 0, %s160
    %s161 = sphi 0, %s158
    %s162 = sphi 0, %s161
    %s178 = sphi 0, %s162
  $region4: #{encoder_block_forward.4} parent=0 // loop_header_branch
    %15 = sbr.rel (%p13) target = $region8
  $region5: #{encoder_block_forward.4} parent=0 // loop_body
    %s17 = ssub.s32 %s12, 1
    %s18 = ssub.s32 %s12, 2
    %s25 = sadd.s32 1, %s20
    %p26 = scmp.ge.s32.totalorder %s25, 1
    %s27 = scalar_select %p26, 0, %s25
    %s28 = sadd.s32 1, %s19
    %s29 = scalar_select %p26, %s28, %s19
    %p30 = scmp.ge.s32.totalorder %s29, 2
    %s31 = scalar_select %p30, 0, %s29
    %s32 = ssub.s32 %s19, %s31
    %p33 = scmp.eq.s32.totalorder %s32, 0
    %s35 = sadd.s32 %s34, 1
    %s36 = scalar_select %p33, %s34, %s35
    %p39 = pneg %p33
    %p40 = scmp.eq.s32.totalorder %s12, 1
    %p41 = por %p39, %p40
    %p42 = scmp.ne.s32.totalorder %s34, %s37
    %p43 = scmp.eq.s32.totalorder %s12, 0
    %p44 = por %p42, %p43
    %p45 = scmp.ne.s32.totalorder %s34, %s37
    %p46 = scmp.eq.s32.totalorder %s17, 1
    %p47 = por %p45, %p46
    %p48 = scmp.ne.s32.totalorder %s37, %s38
    %p49 = scmp.eq.s32.totalorder %s17, 0
    %p50 = por %p48, %p49
    %p51 = scmp.ne.s32.totalorder %s37, %s38
    %p52 = scmp.eq.s32.totalorder %s18, 1
    %p53 = por %p51, %p52
    %p55 = scmp.ne.s32.totalorder %s38, %s54
    %p56 = scmp.eq.s32.totalorder %s18, 0
    %p57 = por %p55, %p56
    %s59 = sadd.s32 %s58, 1
    %p62 = scmp.eq.s32.totalorder %s12, 1
    %p63 = scmp.ne.s32.totalorder %s58, %s60
    %p64 = scmp.eq.s32.totalorder %s12, 0
    %p65 = por %p63, %p64
    %p66 = scmp.ne.s32.totalorder %s58, %s60
    %p67 = scmp.eq.s32.totalorder %s17, 1
    %p68 = por %p66, %p67
    %p69 = scmp.ne.s32.totalorder %s60, %s61
    %p70 = scmp.eq.s32.totalorder %s17, 0
    %p71 = por %p69, %p70
    %p72 = scmp.ne.s32.totalorder %s60, %s61
    %p73 = scmp.eq.s32.totalorder %s18, 1
    %p74 = por %p72, %p73
    %p76 = scmp.ne.s32.totalorder %s61, %s75
    %p77 = scmp.eq.s32.totalorder %s18, 0
    %p78 = por %p76, %p77
    %s80 = sadd.s32 %s79, 1
    %p83 = scmp.eq.s32.totalorder %s12, 1
    %p84 = scmp.ne.s32.totalorder %s79, %s81
    %p85 = scmp.eq.s32.totalorder %s12, 0
    %p86 = por %p84, %p85
    %p87 = scmp.ne.s32.totalorder %s79, %s81
    %p88 = scmp.eq.s32.totalorder %s17, 1
    %p89 = por %p87, %p88
    %p90 = scmp.ne.s32.totalorder %s81, %s82
    %p91 = scmp.eq.s32.totalorder %s17, 0
    %p92 = por %p90, %p91
    %p93 = scmp.ne.s32.totalorder %s81, %s82
    %p94 = scmp.eq.s32.totalorder %s18, 1
    %p95 = por %p93, %p94
    %p97 = scmp.ne.s32.totalorder %s82, %s96
    %p98 = scmp.eq.s32.totalorder %s18, 0
    %p99 = por %p97, %p98
    %s100 = ssub.s32 %s20, %s27
    %p101 = scmp.eq.s32.totalorder %s100, 0
    %s103 = sadd.s32 %s102, 1
    %s104 = scalar_select %p101, %s102, %s103
    %p107 = pneg %p101
    %p108 = scmp.eq.s32.totalorder %s12, 1
    %p109 = por %p107, %p108
    %p110 = scmp.ne.s32.totalorder %s102, %s105
    %p111 = scmp.eq.s32.totalorder %s12, 0
    %p112 = por %p110, %p111
    %p113 = scmp.ne.s32.totalorder %s102, %s105
    %p114 = scmp.eq.s32.totalorder %s17, 1
    %p115 = por %p113, %p114
    %p116 = scmp.ne.s32.totalorder %s105, %s106
    %p117 = scmp.eq.s32.totalorder %s17, 0
    %p118 = por %p116, %p117
    %p119 = scmp.ne.s32.totalorder %s105, %s106
    %p120 = scmp.eq.s32.totalorder %s18, 1
    %p121 = por %p119, %p120
    %p123 = scmp.ne.s32.totalorder %s106, %s122
    %p124 = scmp.eq.s32.totalorder %s18, 0
    %p125 = por %p123, %p124
    %s126 = ssub.s32 %s19, %s31
    %s127 = ssub.s32 %s20, %s27
    %s128 = sor.u32 %s126, %s127
    %p129 = scmp.eq.s32.totalorder %s128, 0
    %s131 = sadd.s32 %s130, 1
    %s132 = scalar_select %p129, %s130, %s131
    %p135 = pneg %p129
    %p136 = scmp.eq.s32.totalorder %s12, 1
    %p137 = por %p135, %p136
    %p138 = scmp.ne.s32.totalorder %s130, %s133
    %p139 = scmp.eq.s32.totalorder %s12, 0
    %p140 = por %p138, %p139
    %p141 = scmp.ne.s32.totalorder %s130, %s133
    %p142 = scmp.eq.s32.totalorder %s17, 1
    %p143 = por %p141, %p142
    %p144 = scmp.ne.s32.totalorder %s133, %s134
    %p145 = scmp.eq.s32.totalorder %s17, 0
    %p146 = por %p144, %p145
    %p147 = scmp.ne.s32.totalorder %s133, %s134
    %p148 = scmp.eq.s32.totalorder %s18, 1
    %p149 = por %p147, %p148
    %p151 = scmp.ne.s32.totalorder %s134, %s150
    %p152 = scmp.eq.s32.totalorder %s18, 0
    %p153 = por %p151, %p152
    %s154 = ssub.s32 %s19, %s31
    %s155 = ssub.s32 %s20, %s27
    %s156 = sor.u32 %s154, %s155
    %p157 = scmp.eq.s32.totalorder %s156, 0
    %s159 = sadd.s32 %s158, 1
    %s160 = scalar_select %p157, %s158, %s159
    %p163 = pneg %p157
    %p164 = scmp.eq.s32.totalorder %s12, 1
    %p165 = por %p163, %p164
    %p166 = scmp.ne.s32.totalorder %s158, %s161
    %p167 = scmp.eq.s32.totalorder %s12, 0
    %p168 = por %p166, %p167
    %p169 = scmp.ne.s32.totalorder %s158, %s161
    %p170 = scmp.eq.s32.totalorder %s17, 1
    %p171 = por %p169, %p170
    %p172 = scmp.ne.s32.totalorder %s161, %s162
    %p173 = scmp.eq.s32.totalorder %s17, 0
    %p174 = por %p172, %p173
    %p175 = scmp.ne.s32.totalorder %s161, %s162
    %p176 = scmp.eq.s32.totalorder %s18, 1
    %p177 = por %p175, %p176
    %p179 = scmp.ne.s32.totalorder %s162, %s178
    %p180 = scmp.eq.s32.totalorder %s18, 0
    %p181 = por %p179, %p180
    %p182 = scmp.le.s32.totalorder 1, %s12
    %p183 = scmp.lt.s32.totalorder %s12, 3
    %p184 = pnand %p182, %p183
    %p185 = pneg %p184
    // Predicated region
    $region9: #{encoder_block_forward.4} parent=5 // pred_check
      _
    $region10: #{encoder_block_forward.4} parent=5 // pred_check_branch
      %187 = sbr.rel (%p184) target = $region12
    $region11: #{encoder_block_forward.4} parent=5 // pred_region
      %s188 = ssub.s32 %s12, 1
      // Predicated region
      $region13: #{encoder_block_forward.4} parent=11 // pred_check
        %p189 = pneg %p71
      $region14: #{encoder_block_forward.4} parent=11 // pred_check_branch
        %191 = sbr.rel (%p189) target = $region16
      $region15: #{encoder_block_forward.4} parent=11 // pred_region
        _
      $region16: #{encoder_block_forward.4} parent=11 // pred_fallthru
        _
      // Predicated region
      $region17: #{encoder_block_forward.4} parent=11 // pred_check
        %p192 = pneg %p92
      $region18: #{encoder_block_forward.4} parent=11 // pred_check_branch
        %194 = sbr.rel (%p192) target = $region20
      $region19: #{encoder_block_forward.4} parent=11 // pred_region
        _
      $region20: #{encoder_block_forward.4} parent=11 // pred_fallthru
        _
      // Predicated region
      $region21: #{encoder_block_forward.4} parent=11 // pred_check
        %p195 = pneg %p118
      $region22: #{encoder_block_forward.4} parent=11 // pred_check_branch
        %197 = sbr.rel (%p195) target = $region24
      $region23: #{encoder_block_forward.4} parent=11 // pred_region
        %p198 = scmp.lt.s32.totalorder %s22, 0
        %s199 = scalar_select %p198, %s22, 0
        %s200 = smul.addr %s199, 8
        %s201 = scalar_lea.vmem %s3, %s200
      $region24: #{encoder_block_forward.4} parent=11 // pred_fallthru
        _
    $region12: #{encoder_block_forward.4} parent=5 // pred_fallthru
      _
    %p202 = scmp.lt.s32.totalorder %s12, 2
    // Predicated region
    $region25: #{encoder_block_forward.4} parent=5 // pred_check
      %p203 = pneg %p202
    $region26: #{encoder_block_forward.4} parent=5 // pred_check_branch
      %205 = sbr.rel (%p203) target = $region28
    $region27: #{encoder_block_forward.4} parent=5 // pred_region
      // Predicated region
      $region29: #{encoder_block_forward.4} parent=27 // pred_check
        %p206 = pneg %p44
      $region30: #{encoder_block_forward.4} parent=27 // pred_check_branch
        %208 = sbr.rel (%p206) target = $region32
      $region31: #{encoder_block_forward.4} parent=27 // pred_region
        %p209 = scmp.lt.s32.totalorder %s19, 1
        %s210 = scalar_select %p209, %s19, 1
        %s211 = smul.addr %s210, 2
        %s212 = smul.addr %s211, 8
        %s213 = scalar_lea.vmem %s0, %s212
      $region32: #{encoder_block_forward.4} parent=27 // pred_fallthru
        _
    $region28: #{encoder_block_forward.4} parent=5 // pred_fallthru
      _
    %p214 = scmp.le.s32.totalorder 1, %s12
    %p215 = scmp.lt.s32.totalorder %s12, 3
    %p216 = pnand %p214, %p215
    %p217 = pneg %p216
    // Predicated region
    $region33: #{encoder_block_forward.4} parent=5 // pred_check
      _
    $region34: #{encoder_block_forward.4} parent=5 // pred_check_branch
      %219 = sbr.rel (%p216) target = $region36
    $region35: #{encoder_block_forward.4} parent=5 // pred_region
      %s220 = ssub.s32 %s12, 1
      %p221 = scmp.lt.s32.totalorder %s21, 1
      %s222 = scalar_select %p221, %s21, 1
      %s223 = smul.addr %s222, 2
      %s224 = smul.addr %s223, 8
      %s225 = scalar_lea.vmem %s0, %s224
      %p226 = pneg %p50
      %p227 = pneg %p47
      %p228 = pneg %p71
      %p229 = pneg %p68
      %p230 = pneg %p92
      %p231 = pneg %p89
      %p232 = scmp.lt.s32.totalorder %s22, 0
      %s233 = scalar_select %p232, %s22, 0
      %s234 = smul.addr %s233, 8
      %s235 = scalar_lea.vmem %s3, %s234
      %p236 = pneg %p118
      %p237 = pneg %p115
      %p238 = pneg %p146
      %p239 = pneg %p143
      %p240 = scmp.lt.s32.totalorder %s21, 1
      %s241 = scalar_select %p240, %s21, 1
      %p242 = scmp.lt.s32.totalorder %s22, 0
      %s243 = scalar_select %p242, %s22, 0
      %s244 = smul.addr %s241, 2
      %s245 = sadd.s32 %s243, %s244
      %s246 = smul.addr %s245, 8
      %s247 = scalar_lea.vmem %s4, %s246
      %p248 = pneg %p174
      %p249 = pneg %p171
      %p250 = scmp.lt.s32.totalorder %s21, 1
      %s251 = scalar_select %p250, %s21, 1
      %p252 = scmp.lt.s32.totalorder %s22, 0
      %s253 = scalar_select %p252, %s22, 0
      %s254 = sadd.s32 %s253, %s251
      %s255 = smul.addr %s254, 2
      %s256 = scalar_lea.vmem %s5, %s255
      %p257 = scmp.lt.s32.totalorder %s21, 1
      %s258 = scalar_select %p257, %s21, 1
      %s259 = smul.addr %s258, 2
      %s260 = smul.addr %s259, 8
      %s261 = scalar_lea.vmem %s0, %s260
      %p262 = scmp.lt.s32.totalorder %s22, 0
      %s263 = scalar_select %p262, %s22, 0
      %s264 = smul.addr %s263, 8
      %s265 = scalar_lea.vmem %s3, %s264
      %p266 = scmp.lt.s32.totalorder %s21, 1
      %s267 = scalar_select %p266, %s21, 1
      %p268 = scmp.lt.s32.totalorder %s22, 0
      %s269 = scalar_select %p268, %s22, 0
      %s270 = smul.addr %s267, 2
      %s271 = sadd.s32 %s269, %s270
      %s272 = smul.addr %s271, 8
      %s273 = scalar_lea.vmem %s4, %s272
      %p274 = scmp.lt.s32.totalorder %s21, 1
      %s275 = scalar_select %p274, %s21, 1
      %p276 = scmp.lt.s32.totalorder %s22, 0
      %s277 = scalar_select %p276, %s22, 0
      %s278 = sadd.s32 %s277, %s275
      %s279 = smul.addr %s278, 2
      %s280 = scalar_lea.vmem %s5, %s279
      %v281 = vld [vmem:[%s261] sm:$0xff]
      %v282 = vld [vmem:[%s261 + $0x8] sm:$0xff]
      %v283 = vld [vmem:[%s1] sm:$0x1]
      %v285 = vlaneseq
      %v286 = vshrl.u32 %v285, 7
      %v287 = vsub.s32 0, %v286
      %v288 = vrot.slane %v283, %v287
      %v290 = vmul.f32 %v281, %v288
      %v291 = vmul.f32 %v282, %v288
      %v292 = vld [vmem:[%s2] sm:$0x1]
      %v294 = vlaneseq
      %v295 = vshrl.u32 %v294, 7
      %v296 = vsub.s32 0, %v295
      %v297 = vrot.slane %v292, %v296
      %v299 = vadd.f32 %v290, %v297
      %v300 = vadd.f32 %v291, %v297
      %v301 = vmax.f32 %v299, 0.0
      %v302 = vmax.f32 %v300, 0.0
      %v303 = vlaneseq
      %v304 = vshrl.u32 %v303, 7
      %v305 = vadd.s32 %v304, 8
      %vm306 = vcmp.eq.s32.totalorder %v304, 0
      %vm307 = vcmp.eq.s32.totalorder %v305, 0
      %v308 = vrot.slane %v301, 7
      %v309 = vrot.slane %v302, 7
      %vm310 = vcmp.lt.s32.totalorder %v304, 1
      %v311 = vsel %vm310, %v308, %v309
      %v312 = vsel %vm310, %v309, %v308
      %v313 = vsel %vm306, 1, 0
      %v314 = vsel %vm307, 1, 0
      %vm315 = vcmp.eq.s32.totalorder %v313, 1
      %vm316 = vcmp.eq.s32.totalorder %v314, 1
      %v317 = vsel %vm315, 0.0, %v312
      %v318 = vsel %vm316, 0.0, %v311
      %vm319 = vcmp.eq.s32.totalorder %v304, 15
      %vm320 = vcmp.eq.s32.totalorder %v305, 15
      %v321 = vrot.slane %v301, 1
      %v322 = vrot.slane %v302, 1
      %vm323 = vcmp.lt.s32.totalorder %v304, 7
      %v324 = vsel %vm323, %v321, %v322
      %v325 = vsel %vm323, %v322, %v321
      %v326 = vsel %vm319, 1, 0
      %v327 = vsel %vm320, 1, 0
      %vm328 = vcmp.eq.s32.totalorder %v326, 1
      %vm329 = vcmp.eq.s32.totalorder %v327, 1
      %v330 = vsel %vm328, 0.0, %v324
      %v331 = vsel %vm329, 0.0, %v325
      %334 = vrot.lane.b32.xlu0 %v301, 32
      %v335 = vpop.permute.xlu0 %334
      %336 = vrot.lane.b32.xlu0 %v302, 32
      %v337 = vpop.permute.xlu0 %336
      %342 = vrot.lane.b32.xlu0 %v330, 64
      %v343 = vpop.permute.xlu0 %342
      %344 = vrot.lane.b32.xlu0 %v331, 64
      %v345 = vpop.permute.xlu0 %344
      %vm348 = vcmask 261120
      %v349 = vsel %vm348, %v317, %v335
      %v350 = vsel %vm348, %v318, %v337
      %vm351 = vcmask 523264
      %v352 = vsel %vm351, %v349, %v343
      %v353 = vsel %vm351, %v350, %v345
      %v354 = vld [vmem:[%s265] sm:$0xff]
      %v355 = vld [vmem:[%s265 + $0x8] sm:$0xff]
      %v356 = vld [vmem:[%s265 + $0x10] sm:$0xff]
      %v357 = vld [vmem:[%s265 + $0x18] sm:$0xff]
      %v358 = vld [vmem:[%s265 + $0x20] sm:$0xff]
      %v359 = vld [vmem:[%s265 + $0x28] sm:$0xff]
      %v360 = vld [vmem:[%s265 + $0x30] sm:$0xff]
      %v361 = vld [vmem:[%s265 + $0x38] sm:$0xff]
      %v362 = vld [vmem:[%s265 + $0x40] sm:$0xff]
      %v363 = vld [vmem:[%s265 + $0x48] sm:$0xff]
      %v364 = vld [vmem:[%s265 + $0x50] sm:$0xff]
      %v365 = vld [vmem:[%s265 + $0x58] sm:$0xff]
      %vm366 = vcmask 785408
      %v368 = vsel %vm366, %v352, 0
      %v371 = vsel %vm366, %v353, 0
      %373 = vmatprep.subr.mxu0 0.0
      %374 = vmatpush1.msra.mxu0 %v354
      %375 = vmatprep.subr.mxu0 0.0
      %376 = vmatpush1.msra.mxu0 %v355
      %377 = vmatprep.subr.mxu0 0.0
      %378 = vmatpush1.msra.mxu0 %v356
      %379 = vmatprep.subr.mxu0 0.0
      %380 = vmatpush1.msra.mxu0 %v357
      %381 = vmatprep.subr.mxu0 0.0
      %382 = vmatpush1.msra.mxu0 %v358
      %383 = vmatprep.subr.mxu0 0.0
      %384 = vmatpush1.msra.mxu0 %v359
      %385 = vmatprep.subr.mxu0 0.0
      %386 = vmatpush1.msra.mxu0 %v360
      %387 = vmatprep.subr.mxu0 0.0
      %388 = vmatpush1.msra.mxu0 %v361
      %389 = vmatprep.subr.mxu0 0.0
      %390 = vmatpush1.msra.mxu0 %v362
      %391 = vmatprep.subr.mxu0 0.0
      %392 = vmatpush1.msra.mxu0 %v363
      %393 = vmatprep.subr.mxu0 0.0
      %394 = vmatpush1.msra.mxu0 %v364
      %395 = vmatprep.subr.mxu0 0.0
      %396 = vmatpush1.msra.mxu0 %v365
      %397 = vmatprep.subr.mxu0 0.0
      %398 = vmatpush1.msra.mxu0 0.0
      %399 = vmatprep.subr.mxu0 0.0
      %400 = vmatpush1.msra.mxu0 0.0
      %401 = vmatprep.subr.mxu0 0.0
      %402 = vmatpush1.msra.mxu0 0.0
      %403 = vmatprep.subr.mxu0 0.0
      %404 = vmatpush1.msra.mxu0 0.0
      %405 = vmatprep.subr.mxu0 0.0
      %406 = vmatpush1.msra.mxu0 0.0
      %407 = vmatprep.subr.mxu0 0.0
      %408 = vmatpush1.msra.mxu0 0.0
      %409 = vmatprep.subr.mxu0 0.0
      %410 = vmatpush1.msra.mxu0 0.0
      %411 = vmatprep.subr.mxu0 0.0
      %412 = vmatpush1.msra.mxu0 0.0
      %413 = vmatprep.subr.mxu0 0.0
      %414 = vmatpush1.msra.mxu0 0.0
      %415 = vmatprep.subr.mxu0 0.0
      %416 = vmatpush1.msra.mxu0 0.0
      %417 = vmatprep.subr.mxu0 0.0
      %418 = vmatpush1.msra.mxu0 0.0
      %419 = vmatprep.subr.mxu0 0.0
      %420 = vmatpush1.msra.mxu0 0.0
      %421 = vmatprep.subr.mxu0 0.0
      %422 = vmatpush1.msra.mxu0 0.0
      %423 = vmatprep.subr.mxu0 0.0
      %424 = vmatpush1.msra.mxu0 0.0
      %425 = vmatprep.subr.mxu0 0.0
      %426 = vmatpush1.msra.mxu0 0.0
      %427 = vmatprep.subr.mxu0 0.0
      %428 = vmatpush1.msra.mxu0 0.0
      %429 = vmatprep.subr.mxu0 0.0
      %430 = vmatpush1.msra.mxu0 0.0
      %431 = vmatprep.subr.mxu0 0.0
      %432 = vmatpush1.msra.mxu0 0.0
      %433 = vmatprep.subr.mxu0 0.0
      %434 = vmatpush1.msra.mxu0 0.0
      %435 = vmatprep.subr.mxu0 0.0
      %436 = vmatpush1.msra.mxu0 0.0
      %437 = vmatprep.mubr.f32.mxu0 0.0
      %438 = vmatmul.mubr.f32.gmra.mrb[0].mxu0 %v368
      %v439 = vpop.f32.mrb[0].mxu0
      %v440 = vadd.f32 0.0, %v439
      %v441 = vpop.f32.mrb[0].mxu0
      %442 = vmatprep.mubr.f32.mxu0 0.0
      %443 = vmatmul.mubr.f32.gmra.mrb[0].mxu0 %v371
      %v444 = vpop.f32.mrb[0].mxu0
      %v445 = vadd.f32 0.0, %v444
      %v446 = vpop.f32.mrb[0].mxu0
      %447 = vdwg.mxu0
      %448 = vst.msk [vmem:[%s273] sm:$0xff] %vm348, %v440
      %449 = vst.msk [vmem:[%s273 + $0x8] sm:$0xff] %vm348, %v445
      %v450 = vsel %vm348, %v440, 0.0
      %v451 = vsel %vm348, %v445, 0.0
      %v452 = vadd.f32 %v450, %v451
      %v453 = vrot.slane %v452, 4
      %v454 = vadd.f32 %v452, %v453
      %v455 = vrot.slane %v454, 2
      %v456 = vadd.f32 %v454, %v455
      %v457 = vrot.slane %v456, 1
      %v458 = vadd.f32 %v456, %v457
      %v459 = vmul.f32 %v440, %v440
      %v460 = vmul.f32 %v445, %v445
      %v461 = vsel %vm348, %v459, 0.0
      %v462 = vsel %vm348, %v460, 0.0
      %v463 = vadd.f32 %v461, %v462
      %v464 = vrot.slane %v463, 4
      %v465 = vadd.f32 %v463, %v464
      %v466 = vrot.slane %v465, 2
      %v467 = vadd.f32 %v465, %v466
      %v468 = vrot.slane %v467, 1
      %v469 = vadd.f32 %v467, %v468
      %vm470 = vcmask 1040384
      %v471 = vsel %vm470, %v458, %v469
      %vm472 = vcmask 254976
      %473 = vst.msk [vmem:[%s280] sm:$0x3] %vm472, %v471
      %p474 = scmp.lt.s32.totalorder %s21, 1
      %s475 = scalar_select %p474, %s21, 1
      %p476 = scmp.lt.s32.totalorder %s22, 0
      %s477 = scalar_select %p476, %s22, 0
      %s478 = smul.addr %s475, 2
      %s479 = sadd.s32 %s477, %s478
      %s480 = smul.addr %s479, 8
      %s481 = scalar_lea.vmem %s4, %s480
      %p482 = scmp.lt.s32.totalorder %s21, 1
      %s483 = scalar_select %p482, %s21, 1
      %p484 = scmp.lt.s32.totalorder %s22, 0
      %s485 = scalar_select %p484, %s22, 0
      %s486 = sadd.s32 %s485, %s483
      %s487 = smul.addr %s486, 2
      %s488 = scalar_lea.vmem %s5, %s487
      // Predicated region
      $region37: #{encoder_block_forward.4} parent=35 // pred_check
        %p489 = pneg %p143
      $region38: #{encoder_block_forward.4} parent=35 // pred_check_branch
        %491 = sbr.rel (%p489) target = $region40
      $region39: #{encoder_block_forward.4} parent=35 // pred_region
        _
      $region40: #{encoder_block_forward.4} parent=35 // pred_fallthru
        _
      // Predicated region
      $region41: #{encoder_block_forward.4} parent=35 // pred_check
        %p492 = pneg %p171
      $region42: #{encoder_block_forward.4} parent=35 // pred_check_branch
        %494 = sbr.rel (%p492) target = $region44
      $region43: #{encoder_block_forward.4} parent=35 // pred_region
        _
      $region44: #{encoder_block_forward.4} parent=35 // pred_fallthru
        _
    $region36: #{encoder_block_forward.4} parent=5 // pred_fallthru
      _
    %p495 = scmp.le.s32.totalorder 2, %s12
    // Predicated region
    $region45: #{encoder_block_forward.4} parent=5 // pred_check
      %p496 = pneg %p495
    $region46: #{encoder_block_forward.4} parent=5 // pred_check_branch
      %498 = sbr.rel (%p496) target = $region48
    $region47: #{encoder_block_forward.4} parent=5 // pred_region
      %s499 = ssub.s32 %s12, 2
      // Predicated region
      $region49: #{encoder_block_forward.4} parent=47 // pred_check
        %p500 = pneg %p149
      $region50: #{encoder_block_forward.4} parent=47 // pred_check_branch
        %502 = sbr.rel (%p500) target = $region52
      $region51: #{encoder_block_forward.4} parent=47 // pred_region
        %p503 = scmp.lt.s32.totalorder %s23, 1
        %s504 = scalar_select %p503, %s23, 1
        %p505 = scmp.lt.s32.totalorder %s24, 0
        %s506 = scalar_select %p505, %s24, 0
        %s507 = smul.addr %s504, 2
        %s508 = sadd.s32 %s506, %s507
        %s509 = smul.addr %s508, 8
        %s510 = scalar_lea.vmem %s4, %s509
      $region52: #{encoder_block_forward.4} parent=47 // pred_fallthru
        _
      // Predicated region
      $region53: #{encoder_block_forward.4} parent=47 // pred_check
        %p511 = pneg %p177
      $region54: #{encoder_block_forward.4} parent=47 // pred_check_branch
        %513 = sbr.rel (%p511) target = $region56
      $region55: #{encoder_block_forward.4} parent=47 // pred_region
        %p514 = scmp.lt.s32.totalorder %s23, 1
        %s515 = scalar_select %p514, %s23, 1
        %p516 = scmp.lt.s32.totalorder %s24, 0
        %s517 = scalar_select %p516, %s24, 0
        %s518 = sadd.s32 %s517, %s515
        %s519 = smul.addr %s518, 2
        %s520 = scalar_lea.vmem %s5, %s519
      $region56: #{encoder_block_forward.4} parent=47 // pred_fallthru
        _
    $region48: #{encoder_block_forward.4} parent=5 // pred_fallthru
      _
  $region6: #{encoder_block_forward.4} parent=0 // loop_footer
    %s16 = sadd.s32 1, %s12
  $region7: #{encoder_block_forward.4} parent=0 // loop_footer_branch
    %11 = sbr.rel target = $region3
  $region8: #{encoder_block_forward.4} parent=0 // loop_exit
    _

// kernel: encoder_block_forward.5
$region0: #{encoder_block_forward.5}
  #allocation0 [shape = 'u32[]', space=smem, size = 0x4, offset = 0x4, fixed_abs, tag = 'smem constant byte address 0x4 - core index']
  #allocation1 [shape = 'u32[144,128]{1,0:T(1,128)}', space=vmem, size = 0x12000, scoped, tag = 'internal scratch']
  %s0 = inlined_call_operand.vmem [shape: f32[2,16,32], index: 0, kind: input, shape index: {}]
  %s1 = inlined_call_operand.vmem [shape: f32[1,32], index: 1, kind: input, shape index: {}]
  %s2 = inlined_call_operand.vmem [shape: f32[1,32], index: 2, kind: input, shape index: {}]
  %s3 = inlined_call_operand.hbm [shape: f32[2,16,32], index: 3, kind: output, shape index: {0}]
  %s4 = inlined_call_operand.hbm [shape: f32[2,8,32], index: 4, kind: output, shape index: {1}]
  %5 = xla_tuple %s3, %s4
  %s6 = sld [smem:[#allocation0]]
  $region53: #{encoder_block_forward.5} parent=0
    _
  %s8 = ssub.s32 1, %s6
  %s9 = scalar_select 0, %s8, %s6
  $region1: #{encoder_block_forward.5} parent=0
    #allocation2 [shape = 'u8[16384]{0}', space=vmem, size = 0x4000, scoped, tag = 'output window, operand 0']
    #allocation3 [shape = 's32[2]{0}', space=sflag, size = 0x8, scoped, tag = 'scoped memory for encoder_block_forward.5']
    #allocation4 [shape = 'u8[8192]{0}', space=vmem, size = 0x2000, scoped, tag = 'output window, operand 1']
    #allocation5 [shape = 's32[2]{0}', space=sflag, size = 0x8, scoped, tag = 'scoped memory for encoder_block_forward.5']
    %10 = vsyncpa [#allocation3], 0
    %s11 = scalar_lea.sflag [#allocation3], 1
    %12 = vsyncpa %s11, 0
    %13 = vsyncpa [#allocation5], 0
    %s14 = scalar_lea.sflag [#allocation5], 1
    %15 = vsyncpa %s14, 0
    loop: start=0, step=1, limit=4
    $region2: #{encoder_block_forward.5} parent=1 // loop_pre_header
      _
    $region3: #{encoder_block_forward.5} parent=1 // loop_header
      %s17 = sphi 0, %s21
      %p18 = scmp.ge.s32.totalorder %s17, 4
      %s24 = sphi 0, %s36
      %s25 = sphi 0, %s32
      %s26 = sphi 0, %s24
      %s27 = sphi 0, %s25
      %s28 = sphi 0, %s26
      %s29 = sphi 0, %s27
      %s41 = sphi 0, %s43
      %s44 = sphi 0, %s41
      %s45 = sphi 0, %s44
      %s61 = sphi 0, %s45
      %s67 = sphi 0, %s69
      %s70 = sphi 0, %s67
      %s71 = sphi 0, %s70
      %s87 = sphi 0, %s71
      %s93 = sphi 0, %s95
      %s96 = sphi 0, %s93
      %s97 = sphi 0, %s96
      %s113 = sphi 0, %s97
      %s121 = sphi 0, %s123
      %s124 = sphi 0, %s121
      %s125 = sphi 0, %s124
      %s141 = sphi 0, %s125
      %s149 = sphi 0, %s151
      %s152 = sphi 0, %s149
      %s153 = sphi 0, %s152
      %s169 = sphi 0, %s153
    $region4: #{encoder_block_forward.5} parent=1 // loop_header_branch
      %20 = sbr.rel (%p18) target = $region8
    $region5: #{encoder_block_forward.5} parent=1 // loop_body
      %s22 = ssub.s32 %s17, 1
      %s23 = ssub.s32 %s17, 2
      %s30 = sadd.s32 1, %s25
      %p31 = scmp.ge.s32.totalorder %s30, 1
      %s32 = scalar_select %p31, 0, %s30
      %s33 = sadd.s32 1, %s24
      %s34 = scalar_select %p31, %s33, %s24
      %p35 = scmp.ge.s32.totalorder %s34, 2
      %s36 = scalar_select %p35, 0, %s34
      %s37 = ssub.s32 %s24, %s36
      %s38 = ssub.s32 %s25, %s32
      %s39 = sor.u32 %s37, %s38
      %p40 = scmp.eq.s32.totalorder %s39, 0
      %s42 = sadd.s32 %s41, 1
      %s43 = scalar_select %p40, %s41, %s42
      %p46 = pneg %p40
      %p47 = scmp.eq.s32.totalorder %s17, 1
      %p48 = por %p46, %p47
      %p49 = scmp.ne.s32.totalorder %s41, %s44
      %p50 = scmp.eq.s32.totalorder %s17, 0
      %p51 = por %p49, %p50
      %p52 = scmp.ne.s32.totalorder %s41, %s44
      %p53 = scmp.eq.s32.totalorder %s22, 1
      %p54 = por %p52, %p53
      %p55 = scmp.ne.s32.totalorder %s44, %s45
      %p56 = scmp.eq.s32.totalorder %s22, 0
      %p57 = por %p55, %p56
      %p58 = scmp.ne.s32.totalorder %s44, %s45
      %p59 = scmp.eq.s32.totalorder %s23, 1
      %p60 = por %p58, %p59
      %p62 = scmp.ne.s32.totalorder %s45, %s61
      %p63 = scmp.eq.s32.totalorder %s23, 0
      %p64 = por %p62, %p63
      %s65 = ssub.s32 %s25, %s32
      %p66 = scmp.eq.s32.totalorder %s65, 0
      %s68 = sadd.s32 %s67, 1
      %s69 = scalar_select %p66, %s67, %s68
      %p72 = pneg %p66
      %p73 = scmp.eq.s32.totalorder %s17, 1
      %p74 = por %p72, %p73
      %p75 = scmp.ne.s32.totalorder %s67, %s70
      %p76 = scmp.eq.s32.totalorder %s17, 0
      %p77 = por %p75, %p76
      %p78 = scmp.ne.s32.totalorder %s67, %s70
      %p79 = scmp.eq.s32.totalorder %s22, 1
      %p80 = por %p78, %p79
      %p81 = scmp.ne.s32.totalorder %s70, %s71
      %p82 = scmp.eq.s32.totalorder %s22, 0
      %p83 = por %p81, %p82
      %p84 = scmp.ne.s32.totalorder %s70, %s71
      %p85 = scmp.eq.s32.totalorder %s23, 1
      %p86 = por %p84, %p85
      %p88 = scmp.ne.s32.totalorder %s71, %s87
      %p89 = scmp.eq.s32.totalorder %s23, 0
      %p90 = por %p88, %p89
      %s91 = ssub.s32 %s25, %s32
      %p92 = scmp.eq.s32.totalorder %s91, 0
      %s94 = sadd.s32 %s93, 1
      %s95 = scalar_select %p92, %s93, %s94
      %p98 = pneg %p92
      %p99 = scmp.eq.s32.totalorder %s17, 1
      %p100 = por %p98, %p99
      %p101 = scmp.ne.s32.totalorder %s93, %s96
      %p102 = scmp.eq.s32.totalorder %s17, 0
      %p103 = por %p101, %p102
      %p104 = scmp.ne.s32.totalorder %s93, %s96
      %p105 = scmp.eq.s32.totalorder %s22, 1
      %p106 = por %p104, %p105
      %p107 = scmp.ne.s32.totalorder %s96, %s97
      %p108 = scmp.eq.s32.totalorder %s22, 0
      %p109 = por %p107, %p108
      %p110 = scmp.ne.s32.totalorder %s96, %s97
      %p111 = scmp.eq.s32.totalorder %s23, 1
      %p112 = por %p110, %p111
      %p114 = scmp.ne.s32.totalorder %s97, %s113
      %p115 = scmp.eq.s32.totalorder %s23, 0
      %p116 = por %p114, %p115
      %s117 = ssub.s32 %s24, %s36
      %s118 = ssub.s32 %s25, %s32
      %s119 = sor.u32 %s117, %s118
      %p120 = scmp.eq.s32.totalorder %s119, 0
      %s122 = sadd.s32 %s121, 1
      %s123 = scalar_select %p120, %s121, %s122
      %p126 = pneg %p120
      %p127 = scmp.eq.s32.totalorder %s17, 1
      %p128 = por %p126, %p127
      %p129 = scmp.ne.s32.totalorder %s121, %s124
      %p130 = scmp.eq.s32.totalorder %s17, 0
      %p131 = por %p129, %p130
      %p132 = scmp.ne.s32.totalorder %s121, %s124
      %p133 = scmp.eq.s32.totalorder %s22, 1
      %p134 = por %p132, %p133
      %p135 = scmp.ne.s32.totalorder %s124, %s125
      %p136 = scmp.eq.s32.totalorder %s22, 0
      %p137 = por %p135, %p136
      %p138 = scmp.ne.s32.totalorder %s124, %s125
      %p139 = scmp.eq.s32.totalorder %s23, 1
      %p140 = por %p138, %p139
      %p142 = scmp.ne.s32.totalorder %s125, %s141
      %p143 = scmp.eq.s32.totalorder %s23, 0
      %p144 = por %p142, %p143
      %s145 = ssub.s32 %s24, %s36
      %s146 = ssub.s32 %s25, %s32
      %s147 = sor.u32 %s145, %s146
      %p148 = scmp.eq.s32.totalorder %s147, 0
      %s150 = sadd.s32 %s149, 1
      %s151 = scalar_select %p148, %s149, %s150
      %p154 = pneg %p148
      %p155 = scmp.eq.s32.totalorder %s17, 1
      %p156 = por %p154, %p155
      %p157 = scmp.ne.s32.totalorder %s149, %s152
      %p158 = scmp.eq.s32.totalorder %s17, 0
      %p159 = por %p157, %p158
      %p160 = scmp.ne.s32.totalorder %s149, %s152
      %p161 = scmp.eq.s32.totalorder %s22, 1
      %p162 = por %p160, %p161
      %p163 = scmp.ne.s32.totalorder %s152, %s153
      %p164 = scmp.eq.s32.totalorder %s22, 0
      %p165 = por %p163, %p164
      %p166 = scmp.ne.s32.totalorder %s152, %s153
      %p167 = scmp.eq.s32.totalorder %s23, 1
      %p168 = por %p166, %p167
      %p170 = scmp.ne.s32.totalorder %s153, %s169
      %p171 = scmp.eq.s32.totalorder %s23, 0
      %p172 = por %p170, %p171
      %p173 = scmp.le.s32.totalorder 1, %s17
      %p174 = scmp.lt.s32.totalorder %s17, 3
      %p175 = pnand %p173, %p174
      %p176 = pneg %p175
      // Predicated region
      $region9: #{encoder_block_forward.5} parent=5 // pred_check
        _
      $region10: #{encoder_block_forward.5} parent=5 // pred_check_branch
        %178 = sbr.rel (%p175) target = $region12
      $region11: #{encoder_block_forward.5} parent=5 // pred_region
        %s179 = ssub.s32 %s17, 1
        // Predicated region
        $region13: #{encoder_block_forward.5} parent=11 // pred_check
          %p180 = pneg %p83
        $region14: #{encoder_block_forward.5} parent=11 // pred_check_branch
          %182 = sbr.rel (%p180) target = $region16
        $region15: #{encoder_block_forward.5} parent=11 // pred_region
          %p183 = scmp.lt.s32.totalorder %s27, 0
          %s184 = scalar_select %p183, %s27, 0
          %s185 = scalar_lea.vmem %s1, %s184
        $region16: #{encoder_block_forward.5} parent=11 // pred_fallthru
          _
        // Predicated region
        $region17: #{encoder_block_forward.5} parent=11 // pred_check
          %p186 = pneg %p109
        $region18: #{encoder_block_forward.5} parent=11 // pred_check_branch
          %188 = sbr.rel (%p186) target = $region20
        $region19: #{encoder_block_forward.5} parent=11 // pred_region
          %p189 = scmp.lt.s32.totalorder %s27, 0
          %s190 = scalar_select %p189, %s27, 0
          %s191 = scalar_lea.vmem %s2, %s190
        $region20: #{encoder_block_forward.5} parent=11 // pred_fallthru
          _
      $region12: #{encoder_block_forward.5} parent=5 // pred_fallthru
        _
      %p192 = scmp.lt.s32.totalorder %s17, 2
      // Predicated region
      $region21: #{encoder_block_forward.5} parent=5 // pred_check
        %p193 = pneg %p192
      $region22: #{encoder_block_forward.5} parent=5 // pred_check_branch
        %195 = sbr.rel (%p193) target = $region24
      $region23: #{encoder_block_forward.5} parent=5 // pred_region
        // Predicated region
        $region25: #{encoder_block_forward.5} parent=23 // pred_check
          %p196 = pneg %p51
        $region26: #{encoder_block_forward.5} parent=23 // pred_check_branch
          %198 = sbr.rel (%p196) target = $region28
        $region27: #{encoder_block_forward.5} parent=23 // pred_region
          %p199 = scmp.lt.s32.totalorder %s24, 1
          %s200 = scalar_select %p199, %s24, 1
          %p201 = scmp.lt.s32.totalorder %s25, 0
          %s202 = scalar_select %p201, %s25, 0
          %s203 = smul.addr %s200, 2
          %s204 = sadd.s32 %s202, %s203
          %s205 = smul.addr %s204, 8
          %s206 = scalar_lea.vmem %s0, %s205
        $region28: #{encoder_block_forward.5} parent=23 // pred_fallthru
          _
      $region24: #{encoder_block_forward.5} parent=5 // pred_fallthru
        _
      %p207 = scmp.le.s32.totalorder 1, %s17
      %p208 = scmp.lt.s32.totalorder %s17, 3
      %p209 = pnand %p207, %p208
      %p210 = pneg %p209
      // Predicated region
      $region29: #{encoder_block_forward.5} parent=5 // pred_check
        _
      $region30: #{encoder_block_forward.5} parent=5 // pred_check_branch
        %212 = sbr.rel (%p209) target = $region32
      $region31: #{encoder_block_forward.5} parent=5 // pred_region
        %s213 = ssub.s32 %s17, 1
        %p214 = scmp.lt.s32.totalorder %s26, 1
        %s215 = scalar_select %p214, %s26, 1
        %p216 = scmp.lt.s32.totalorder %s27, 0
        %s217 = scalar_select %p216, %s27, 0
        %s218 = smul.addr %s215, 2
        %s219 = sadd.s32 %s217, %s218
        %s220 = smul.addr %s219, 8
        %s221 = scalar_lea.vmem %s0, %s220
        %p222 = pneg %p57
        %p223 = pneg %p54
        %p224 = scmp.lt.s32.totalorder %s27, 0
        %s225 = scalar_select %p224, %s27, 0
        %s226 = scalar_lea.vmem %s1, %s225
        %p227 = pneg %p83
        %p228 = pneg %p80
        %p229 = scmp.lt.s32.totalorder %s27, 0
        %s230 = scalar_select %p229, %s27, 0
        %s231 = scalar_lea.vmem %s2, %s230
        %p232 = pneg %p109
        %p233 = pneg %p106
        %p234 = pneg %p137
        %p235 = pneg %p134
        %s236 = sand.u32 %s124, 1
        %s237 = scalar_lea.sflag [#allocation3], %s236
        %s238 = sand.u32 %s124, 1
        %s239 = smul.addr %s238, 16
        %s240 = scalar_lea.vmem [#allocation2], %s239
        %p241 = pneg %p165
        %p242 = pneg %p162
        %s243 = sand.u32 %s152, 1
        %s244 = scalar_lea.sflag [#allocation5], %s243
        %s245 = sand.u32 %s152, 1
        %s246 = smul.addr %s245, 8
        %s247 = scalar_lea.vmem [#allocation4], %s246
        %p248 = scmp.lt.s32.totalorder %s26, 1
        %s249 = scalar_select %p248, %s26, 1
        %p250 = scmp.lt.s32.totalorder %s27, 0
        %s251 = scalar_select %p250, %s27, 0
        %s252 = smul.addr %s249, 2
        %s253 = sadd.s32 %s251, %s252
        %s254 = smul.addr %s253, 8
        %s255 = scalar_lea.vmem %s0, %s254
        %p256 = scmp.lt.s32.totalorder %s27, 0
        %s257 = scalar_select %p256, %s27, 0
        %s258 = scalar_lea.vmem %s1, %s257
        %p259 = scmp.lt.s32.totalorder %s27, 0
        %s260 = scalar_select %p259, %s27, 0
        %s261 = scalar_lea.vmem %s2, %s260
        %v262 = vld [vmem:[%s255] sm:$0xff]
        %v263 = vld [vmem:[%s255 + $0x8] sm:$0xff]
        %v264 = vld [vmem:[%s258] sm:$0x1]
        %v266 = vlaneseq
        %v267 = vshrl.u32 %v266, 7
        %v268 = vsub.s32 0, %v267
        %v269 = vrot.slane %v264, %v268
        %v271 = vmul.f32 %v262, %v269
        %v272 = vmul.f32 %v263, %v269
        %v273 = vld [vmem:[%s261] sm:$0x1]
        %v275 = vlaneseq
        %v276 = vshrl.u32 %v275, 7
        %v277 = vsub.s32 0, %v276
        %v278 = vrot.slane %v273, %v277
        %v280 = vadd.f32 %v271, %v278
        %v281 = vadd.f32 %v272, %v278
        %v282 = vmax.f32 %v280, 0.0
        %v283 = vmax.f32 %v281, 0.0
        %vm284 = vcmask 261120
        %285 = vst.msk [vmem:[%s240] sm:$0xff] %vm284, %v282
        %286 = vst.msk [vmem:[%s240 + $0x8] sm:$0xff] %vm284, %v283
        %v289 = vcombine.high %v282, %v282
        %v291 = vunpack.c.l.s4 1983009808
        %v292 = vunpack.c.0.s8 %v291
        %v293 = vlaneseq
        %v294 = vshrl.u32 %v293, 7
        %v295 = vsub.s32 %v292, %v294
        %v296 = vrot.slane %v282, %v295
        %v298 = vunpack.c.l.s4 1983009808
        %v299 = vunpack.c.0.s8 %v298
        %v300 = vlaneseq
        %v301 = vshrl.u32 %v300, 7
        %v302 = vsub.s32 %v299, %v301
        %v303 = vrot.slane %v289, %v302
        %v304 = vcombine.high %v296, %v296
        %v305 = vcombine.high %v303, %v303
        %v306 = vcombine.high %v283, %v283
        %v308 = vunpack.c.l.s4 1983009808
        %v309 = vunpack.c.0.s8 %v308
        %v310 = vlaneseq
        %v311 = vshrl.u32 %v310, 7
        %v312 = vsub.s32 %v309, %v311
        %v313 = vrot.slane %v283, %v312
        %v315 = vunpack.c.l.s4 1983009808
        %v316 = vunpack.c.0.s8 %v315
        %v317 = vlaneseq
        %v318 = vshrl.u32 %v317, 7
        %v319 = vsub.s32 %v316, %v318
        %v320 = vrot.slane %v306, %v319
        %v321 = vcombine.high %v313, %v313
        %v322 = vcombine.high %v320, %v320
        %v331 = vrot.slane %v296, 7
        %v332 = vrot.slane %v331, 2
        %v333 = vrot.slane %v304, 7
        %v334 = vrot.slane %v333, 2
        %v335 = vrot.slane %v303, 7
        %v336 = vrot.slane %v335, 2
        %v337 = vrot.slane %v305, 7
        %v338 = vrot.slane %v337, 2
        %v339 = vrot.slane %v313, 7
        %v340 = vrot.slane %v339, 2
        %v341 = vrot.slane %v321, 7
        %v342 = vrot.slane %v341, 2
        %v343 = vrot.slane %v320, 7
        %v344 = vrot.slane %v343, 2
        %v345 = vrot.slane %v322, 7
        %v346 = vrot.slane %v345, 2
        %v355 = vmax.f32 %v296, %v332
        %v356 = vmax.f32 %v304, %v334
        %v357 = vmax.f32 %v303, %v336
        %v358 = vmax.f32 %v305, %v338
        %v359 = vmax.f32 %v313, %v340
        %v360 = vmax.f32 %v321, %v342
        %v361 = vmax.f32 %v320, %v344
        %v362 = vmax.f32 %v322, %v346
        %v371 = vlaneseq
        %v372 = vshrl.u32 %v371, 7
        %v373 = vsub.s32 0, %v372
        %v374 = vrot.slane %v355, %v373
        %v375 = vlaneseq
        %v376 = vshrl.u32 %v375, 7
        %v377 = vsub.s32 0, %v376
        %v378 = vrot.slane %v356, %v377
        %v379 = vlaneseq
        %v380 = vshrl.u32 %v379, 7
        %v381 = vsub.s32 0, %v380
        %v382 = vrot.slane %v357, %v381
        %v383 = vlaneseq
        %v384 = vshrl.u32 %v383, 7
        %v385 = vsub.s32 0, %v384
        %v386 = vrot.slane %v358, %v385
        %v387 = vlaneseq
        %v388 = vshrl.u32 %v387, 7
        %v389 = vsub.s32 0, %v388
        %v390 = vrot.slane %v359, %v389
        %v391 = vlaneseq
        %v392 = vshrl.u32 %v391, 7
        %v393 = vsub.s32 0, %v392
        %v394 = vrot.slane %v360, %v393
        %v395 = vlaneseq
        %v396 = vshrl.u32 %v395, 7
        %v397 = vsub.s32 0, %v396
        %v398 = vrot.slane %v361, %v397
        %v399 = vlaneseq
        %v400 = vshrl.u32 %v399, 7
        %v401 = vsub.s32 0, %v400
        %v402 = vrot.slane %v362, %v401
        %vm403 = vcmask 1041409
        %v404 = vsel %vm403, %v378, %v374
        %vm405 = vcmask 1042434
        %v406 = vsel %vm405, %v382, %v404
        %vm407 = vcmask 1043459
        %v408 = vsel %vm407, %v386, %v406
        %vm409 = vcmask 1044484
        %v410 = vsel %vm409, %v390, %v408
        %vm411 = vcmask 1045509
        %v412 = vsel %vm411, %v394, %v410
        %vm413 = vcmask 1046534
        %v414 = vsel %vm413, %v398, %v412
        %vm415 = vcmask 1047559
        %v416 = vsel %vm415, %v402, %v414
        %418 = vst.msk [vmem:[%s247] sm:$0xff] %vm284, %v416
        %s419 = sand.u32 %s124, 1
        %s420 = scalar_lea.sflag [#allocation3], %s419
        %s421 = sand.u32 %s124, 1
        %s422 = smul.addr %s421, 16
        %s423 = scalar_lea.vmem [#allocation2], %s422
        %s424 = sand.u32 %s152, 1
        %s425 = scalar_lea.sflag [#allocation5], %s424
        %s426 = sand.u32 %s152, 1
        %s427 = smul.addr %s426, 8
        %s428 = scalar_lea.vmem [#allocation4], %s427
        // Predicated region
        $region33: #{encoder_block_forward.5} parent=31 // pred_check
          %p429 = pneg %p134
        $region34: #{encoder_block_forward.5} parent=31 // pred_check_branch
          %431 = sbr.rel (%p429) target = $region36
        $region35: #{encoder_block_forward.5} parent=31 // pred_region
          %s433 = ssub.s32 256, 256
          %434 = vsyncadd %s420, %s433
          %s435 = smul.addr %s26, 2
          %s436 = sadd.s32 %s27, %s435
          %s437 = smul.addr %s436, 128
          %s438 = scalar_lea.hbm %s3, %s437
          %s439 = sshll.u32 %s423, 4
          %s440 = int_to_ptr.vmem [resolvable:$true] %s439
          %445 = dma.vmem_to_hbm [thread:$0]  %s440, 256, %s438, %s420, 128, 128, 8
        $region36: #{encoder_block_forward.5} parent=31 // pred_fallthru
          _
        // Predicated region
        $region37: #{encoder_block_forward.5} parent=31 // pred_check
          %p446 = pneg %p162
        $region38: #{encoder_block_forward.5} parent=31 // pred_check_branch
          %448 = sbr.rel (%p446) target = $region40
        $region39: #{encoder_block_forward.5} parent=31 // pred_region
          %s450 = ssub.s32 128, 128
          %451 = vsyncadd %s425, %s450
          %s452 = sadd.s32 %s27, %s26
          %s453 = smul.addr %s452, 128
          %s454 = scalar_lea.hbm %s4, %s453
          %s456 = sshll.u32 %s428, 4
          %s457 = int_to_ptr.vmem [resolvable:$true] %s456
          %459 = dma.vmem_to_hbm [thread:$0]  %s457, 128, %s454, %s425
        $region40: #{encoder_block_forward.5} parent=31 // pred_fallthru
          _
      $region32: #{encoder_block_forward.5} parent=5 // pred_fallthru
        _
      %p460 = scmp.le.s32.totalorder 2, %s17
      // Predicated region
      $region41: #{encoder_block_forward.5} parent=5 // pred_check
        %p461 = pneg %p460
      $region42: #{encoder_block_forward.5} parent=5 // pred_check_branch
        %463 = sbr.rel (%p461) target = $region44
      $region43: #{encoder_block_forward.5} parent=5 // pred_region
        %s464 = ssub.s32 %s17, 2
        // Predicated region
        $region45: #{encoder_block_forward.5} parent=43 // pred_check
          %p465 = pneg %p140
        $region46: #{encoder_block_forward.5} parent=43 // pred_check_branch
          %467 = sbr.rel (%p465) target = $region48
        $region47: #{encoder_block_forward.5} parent=43 // pred_region
          %s468 = sand.u32 %s125, 1
          %s469 = scalar_lea.sflag [#allocation3], %s468
          %s470 = sand.u32 %s125, 1
          %s471 = smul.addr %s470, 16
          %s472 = scalar_lea.vmem [#allocation2], %s471
          %473 = dma.done %s469, 256
        $region48: #{encoder_block_forward.5} parent=43 // pred_fallthru
          _
        // Predicated region
        $region49: #{encoder_block_forward.5} parent=43 // pred_check
          %p474 = pneg %p168
        $region50: #{encoder_block_forward.5} parent=43 // pred_check_branch
          %476 = sbr.rel (%p474) target = $region52
        $region51: #{encoder_block_forward.5} parent=43 // pred_region
          %s477 = sand.u32 %s153, 1
          %s478 = scalar_lea.sflag [#allocation5], %s477
          %s479 = sand.u32 %s153, 1
          %s480 = smul.addr %s479, 8
          %s481 = scalar_lea.vmem [#allocation4], %s480
          %482 = dma.done %s478, 128
        $region52: #{encoder_block_forward.5} parent=43 // pred_fallthru
          _
      $region44: #{encoder_block_forward.5} parent=5 // pred_fallthru
        _
    $region6: #{encoder_block_forward.5} parent=1 // loop_footer
      %s21 = sadd.s32 1, %s17
    $region7: #{encoder_block_forward.5} parent=1 // loop_footer_branch
      %16 = sbr.rel target = $region3
    $region8: #{encoder_block_forward.5} parent=1 // loop_exit
      _
    %483 = vsyncpa [#allocation3], 1
    %s484 = scalar_lea.sflag [#allocation3], 1
    %485 = vsyncpa %s484, 1
    %486 = vsyncpa [#allocation5], 1
    %s487 = scalar_lea.sflag [#allocation5], 1
    %488 = vsyncpa %s487, 1

</llo_original>
